<compile_context>
chip_gen: v5e
topology: v5e:2x2
jax: 0.10.0
libtpu: 0.0.40
codegen_flags: <defaults>
</compile_context>

<pallas_src>
import functools

import numpy as np

import jax
import jax.numpy as jnp
from jax.experimental import pallas as pl
from jax.experimental.pallas import tpu as pltpu


H1, W1 = 5, 25
H2, W2 = 10, 50
HW1, HW2 = H1 * W1, H2 * W2
HWP1, HWP2 = 128, 512          # per-image lane widths, padded to multiples of 128


# ----------------------------------------------------------------------------
# Host-side precompute of constant masks / matrices (done once, outside jit)
# ----------------------------------------------------------------------------
def _tap_masks_3x3(H, W, hwp):
    """(9, hwp) per-image 0/1 validity masks for ConvT 3x3 s1 p1 taps."""
    hw = H * W
    p = np.arange(hwp)
    i, j = p // W, p % W
    valid = p < hw
    out = np.zeros((9, hwp), np.float32)
    for ky in range(3):
        for kx in range(3):
            di, dj = 1 - ky, 1 - kx
            ok = valid & (i + di >= 0) & (i + di < H) & (j + dj >= 0) & (j + dj < W)
            out[ky * 3 + kx] = ok.astype(np.float32)
    return out


def _upsample2x_matrix(H, W, hwp_in, hwp_out):
    """(hwp_in, hwp_out) per-image nearest-neighbour 2x upsample matrix."""
    W2 = 2 * W
    G = np.zeros((hwp_in, hwp_out), np.float32)
    for a in range(2 * H):
        for b in range(W2):
            G[(a // 2) * W + (b // 2), a * W2 + b] = 1.0
    return G


def _subpixel_masks(H, W, hwp_out):
    """(4, hwp_out) per-image masks: which (ky,kx) sub-pixel each lane is."""
    W2 = 2 * W
    sel = np.zeros((4, hwp_out), np.float32)
    for a in range(2 * H):
        for b in range(W2):
            sel[(a % 2) * 2 + (b % 2), a * W2 + b] = 1.0
    return sel


def _stacked_conv_weight(w, batch):
    """(Ci, Co, k, k) ConvTranspose weight -> (Co*B, k*k*Ci*B) row-mix matrix."""
    w = np.asarray(w, np.float32)
    k = w.shape[2]
    eye_b = np.eye(batch, dtype=np.float32)
    blocks = [np.kron(w[:, :, ky, kx].T, eye_b)            # (Co*B, Ci*B)
              for ky in range(k) for kx in range(k)]
    return np.concatenate(blocks, axis=1)


# ----------------------------------------------------------------------------
# Single fused Pallas kernel: whole Decoder forward in VMEM
# ----------------------------------------------------------------------------
def _decoder_kernel(x_ref, w3_ref, b3_ref, w4_ref, b4_ref,
                    wk1_ref, wk2_ref, wk3_ref, wk4_ref,
                    gamma_ref, beta_ref, pm_ref,
                    m9a_ref, m9b_ref, sel_ref, gup_ref,
                    out_ref, act0_ref, stk_ref, *, batch, dim, eps):
    f32 = jnp.float32
    db = dim * batch

    # ---- fc_3 / fc_4 head ---------------------------------------------------
    h3 = jnp.maximum(jnp.dot(x_ref[...], w3_ref[...], preferred_element_type=f32)
                     + b3_ref[...], 0.0)
    h4 = jnp.maximum(jnp.dot(h3, w4_ref[...], preferred_element_type=f32)
                     + b4_ref[...], 0.0)                    # (batch, dim*HWP1)

    # ---- view(B, dim, 5, 25): rows (c*batch + n), per-image 128-lane blocks --
    for c in range(dim):
        act0_ref[c * batch:(c + 1) * batch, :] = h4[:, c * HWP1:(c + 1) * HWP1]
    act = act0_ref[...]                                     # (db, HWP1)

    m9a = m9a_ref[...]
    m9b = m9b_ref[...]
    pma = pm_ref[0]                                         # includes 1/(B*hw)
    pmb = pm_ref[1]

    def conv3x3(a, wk_ref, m9, width, hwp):
        # 9 rolled+masked tap copies stacked along sublanes, one MXU matmul.
        for ky in range(3):
            for kx in range(3):
                t = ky * 3 + kx
                d = (1 - ky) * width + (1 - kx)
                s = (-d) % hwp
                r = a if s == 0 else pltpu.roll(a, shift=s, axis=1)
                stk_ref[t * db:(t + 1) * db, :hwp] = r * m9[t:t + 1, :]
        x9 = stk_ref[:9 * db, :hwp]                         # (9*db, hwp)
        return jnp.dot(wk_ref[...], x9, preferred_element_type=f32)

    def bn_relu(v, stage, pm):
        # Train-mode BatchNorm2d, single-pass stats; pad lanes of v are zero.
        gamma = gamma_ref[stage]                            # (db, 1)
        beta = beta_ref[stage]                              # (db, 1)
        mean = jnp.sum(jnp.dot(pm, v, preferred_element_type=f32),
                       axis=1, keepdims=True)               # (db, 1)
        ex2 = jnp.sum(jnp.dot(pm, v * v, preferred_element_type=f32),
                      axis=1, keepdims=True)
        var = ex2 - mean * mean
        scale = jax.lax.rsqrt(var + eps) * gamma
        return jnp.maximum((v - mean) * scale + beta, 0.0)

    # ---- trans_conv_1 / trans_conv_2 : ConvT 3x3 s1 p1 on 5x25 ---------------
    act = bn_relu(conv3x3(act, wk1_ref, m9a, W1, HWP1), 0, pma)
    act = bn_relu(conv3x3(act, wk2_ref, m9a, W1, HWP1), 1, pma)

    # ---- trans_conv_3 : ConvT 2x2 s2 = per-image upsample matmul + stacked
    #      sub-pixel mixing matmul ---------------------------------------------
    up = jnp.dot(act, gup_ref[...], preferred_element_type=f32)   # (db, HWP2)
    sel = sel_ref[...]
    for t in range(4):
        stk_ref[t * db:(t + 1) * db, :] = up * sel[t:t + 1, :]
    act = bn_relu(jnp.dot(wk3_ref[...], stk_ref[:4 * db, :],
                          preferred_element_type=f32), 2, pmb)

    # ---- trans_conv_4 : ConvT 3x3 s1 p1 on 10x50 -----------------------------
    act = bn_relu(conv3x3(act, wk4_ref, m9b, W2, HWP2), 3, pmb)

    out_ref[...] = act                                      # (db, HWP2), lane-dense


# ----------------------------------------------------------------------------
# Parameter creation / preparation
# ----------------------------------------------------------------------------
def init_params(key, in_channel, dim):
    keys = jax.random.split(key, 20)
    n = lambda k, shape, s: s * jax.random.normal(k, shape, jnp.float32)
    p = {
        "fc3_w": n(keys[0], (in_channel, 256), 0.05),
        "fc3_b": n(keys[1], (256,), 0.05),
        "fc4_w": n(keys[2], (256, dim * HW1), 0.05),
        "fc4_b": n(keys[3], (dim * HW1,), 0.05),
    }
    conv_ks = {1: 3, 2: 3, 3: 2, 4: 3}
    for idx in range(1, 5):
        base = 4 + (idx - 1) * 4
        k = conv_ks[idx]
        p[f"tc{idx}_w"] = n(keys[base + 0], (dim, dim, k, k), 0.2)  # (Ci,Co,k,k)
        # ConvTranspose biases exist in the module but are a no-op before
        # train-mode BatchNorm; generated for faithfulness, not used.
        p[f"tc{idx}_b"] = n(keys[base + 1], (dim,), 0.2)
        p[f"bn{idx}_g"] = 1.0 + n(keys[base + 2], (dim,), 0.1)
        p[f"bn{idx}_b"] = n(keys[base + 3], (dim,), 0.1)
    return p


def prepare_decoder(params, *, dim, batch):
    """Precompute all derived constants once (outside the per-call forward)."""
    # fc_4 weights re-packed so each channel's 125 outputs sit in a 128-wide,
    # zero-padded lane block.
    w4 = np.asarray(params["fc4_w"], np.float32)
    b4 = np.asarray(params["fc4_b"], np.float32)
    w4z = np.zeros((w4.shape[0], dim * HWP1), np.float32)
    b4z = np.zeros((1, dim * HWP1), np.float32)
    for c in range(dim):
        w4z[:, c * HWP1:c * HWP1 + HW1] = w4[:, c * HW1:(c + 1) * HW1]
        b4z[0, c * HWP1:c * HWP1 + HW1] = b4[c * HW1:(c + 1) * HW1]

    # BN affine params broadcast to rows ordered (channel major, batch minor).
    gamma = np.stack([np.repeat(np.asarray(params[f"bn{i}_g"], np.float32), batch)
                      for i in range(1, 5)])[:, :, None]            # (4, db, 1)
    beta = np.stack([np.repeat(np.asarray(params[f"bn{i}_b"], np.float32), batch)
                     for i in range(1, 5)])[:, :, None]

    # Per-channel (over batch rows) reduction+broadcast matrices with 1/count.
    P = np.kron(np.eye(dim, dtype=np.float32), np.ones((batch, batch), np.float32))
    pm = np.stack([P / (batch * HW1), P / (batch * HW2)])            # (2, db, db)

    return {
        "w3": jnp.asarray(params["fc3_w"], jnp.float32),
        "b3": jnp.asarray(params["fc3_b"], jnp.float32).reshape(1, -1),
        "w4z": jnp.asarray(w4z), "b4z": jnp.asarray(b4z),
        "wk1": jnp.asarray(_stacked_conv_weight(params["tc1_w"], batch)),
        "wk2": jnp.asarray(_stacked_conv_weight(params["tc2_w"], batch)),
        "wk3": jnp.asarray(_stacked_conv_weight(params["tc3_w"], batch)),
        "wk4": jnp.asarray(_stacked_conv_weight(params["tc4_w"], batch)),
        "gamma": jnp.asarray(gamma), "beta": jnp.asarray(beta),
        "pm": jnp.asarray(pm),
        "m9a": jnp.asarray(_tap_masks_3x3(H1, W1, HWP1)),
        "m9b": jnp.asarray(_tap_masks_3x3(H2, W2, HWP2)),
        "sel": jnp.asarray(_subpixel_masks(H1, W1, HWP2)),
        "gup": jnp.asarray(_upsample2x_matrix(H1, W1, HWP1, HWP2)),
    }


# ----------------------------------------------------------------------------
# Forward: one fused pallas_call + a tiny final NCHW relabel
# ----------------------------------------------------------------------------
@functools.partial(jax.jit, static_argnames=("dim", "batch"))
def decoder_forward(prep, x, *, dim, batch):
    db = dim * batch
    kernel = functools.partial(_decoder_kernel, batch=batch, dim=dim, eps=1e-5)
    n_inputs = 16
    yk = pl.pallas_call(
        kernel,
        out_shape=jax.ShapeDtypeStruct((db, HWP2), jnp.float32),
        in_specs=[pl.BlockSpec(memory_space=pltpu.MemorySpace.VMEM)] * n_inputs,
        out_specs=pl.BlockSpec(memory_space=pltpu.MemorySpace.VMEM),
        scratch_shapes=[
            pltpu.VMEM((db, HWP1), jnp.float32),        # fc -> conv relayout buffer
            pltpu.VMEM((9 * db, HWP2), jnp.float32),    # stacked-tap / sub-pixel buffer
        ],
    )(x.astype(jnp.float32), prep["w3"], prep["b3"], prep["w4z"], prep["b4z"],
      prep["wk1"], prep["wk2"], prep["wk3"], prep["wk4"],
      prep["gamma"], prep["beta"], prep["pm"],
      prep["m9a"], prep["m9b"], prep["sel"], prep["gup"])

    # Tiny (16 KiB) relabel back to PyTorch NCHW: (B, dim, 10, 50).
    y = yk.reshape(dim, batch, HWP2)[:, :, :HW2].reshape(dim, batch, H2, W2)
    return jnp.transpose(y, (1, 0, 2, 3))


if __name__ == "__main__":
    in_channel, dim, batch = 32, 4, 2
    key = jax.random.PRNGKey(0)
    kx, kp = jax.random.split(key)
    params = init_params(kp, in_channel, dim)
    prep = prepare_decoder(params, dim=dim, batch=batch)
    x = jax.random.normal(kx, (batch, in_channel), jnp.float32)

    y = decoder_forward(prep, x, dim=dim, batch=batch)
    y = jax.block_until_ready(y)

    assert y.shape == (batch, dim, 10, 50), y.shape
    assert bool(jnp.all(jnp.isfinite(y)))
    print("KERNEL_OK")
</pallas_src>

<mosaic_0001>
module attributes {stable_mosaic.version = 11 : i64} {
  func.func @_decoder_kernel(%arg0: memref<2x32xf32, #tpu.memory_space<vmem>>, %arg1: memref<32x256xf32, #tpu.memory_space<vmem>>, %arg2: memref<1x256xf32, #tpu.memory_space<vmem>>, %arg3: memref<256x512xf32, #tpu.memory_space<vmem>>, %arg4: memref<1x512xf32, #tpu.memory_space<vmem>>, %arg5: memref<8x72xf32, #tpu.memory_space<vmem>>, %arg6: memref<8x72xf32, #tpu.memory_space<vmem>>, %arg7: memref<8x32xf32, #tpu.memory_space<vmem>>, %arg8: memref<8x72xf32, #tpu.memory_space<vmem>>, %arg9: memref<4x8x1xf32, #tpu.memory_space<vmem>>, %arg10: memref<4x8x1xf32, #tpu.memory_space<vmem>>, %arg11: memref<2x8x8xf32, #tpu.memory_space<vmem>>, %arg12: memref<9x128xf32, #tpu.memory_space<vmem>>, %arg13: memref<9x512xf32, #tpu.memory_space<vmem>>, %arg14: memref<4x512xf32, #tpu.memory_space<vmem>>, %arg15: memref<128x512xf32, #tpu.memory_space<vmem>>, %arg16: memref<8x512xf32, #tpu.memory_space<vmem>>, %arg17: memref<8x128xf32, #tpu.memory_space<vmem>>, %arg18: memref<72x512xf32, #tpu.memory_space<vmem>>) attributes {dimension_semantics = [], scalar_prefetch = 0 : i64, scratch_operands = 2 : i64, tpu.core_type = #tpu.core_type<tc>} {
    %c0 = arith.constant 0 : index
    %c0_0 = arith.constant 0 : index
    %0 = vector.load %arg0[%c0, %c0_0] : memref<2x32xf32, #tpu.memory_space<vmem>>, vector<2x32xf32>
    %c0_1 = arith.constant 0 : index
    %c0_2 = arith.constant 0 : index
    %1 = vector.load %arg1[%c0_1, %c0_2] : memref<32x256xf32, #tpu.memory_space<vmem>>, vector<32x256xf32>
    %cst = arith.constant dense<0.000000e+00> : vector<2x256xf32>
    %2 = tpu.matmul %0, %1, %cst {dimension_numbers = #tpu.dot_dimension_numbers<[1], [0], [0], [1], [0, 0, 1, 1], [], []>} : vector<2x32xf32>, vector<32x256xf32>, vector<2x256xf32> -> vector<2x256xf32>
    %c0_3 = arith.constant 0 : index
    %c0_4 = arith.constant 0 : index
    %3 = vector.load %arg2[%c0_3, %c0_4] : memref<1x256xf32, #tpu.memory_space<vmem>>, vector<1x256xf32>
    %4 = vector.broadcast %3 : vector<1x256xf32> to vector<2x256xf32>
    %5 = arith.addf %2, %4 : vector<2x256xf32>
    %cst_5 = arith.constant 0.000000e+00 : f32
    %6 = vector.broadcast %cst_5 : f32 to vector<2x256xf32>
    %7 = arith.maximumf %5, %6 : vector<2x256xf32>
    %c0_6 = arith.constant 0 : index
    %c0_7 = arith.constant 0 : index
    %8 = vector.load %arg3[%c0_6, %c0_7] : memref<256x512xf32, #tpu.memory_space<vmem>>, vector<256x512xf32>
    %cst_8 = arith.constant dense<0.000000e+00> : vector<2x512xf32>
    %9 = tpu.matmul %7, %8, %cst_8 {dimension_numbers = #tpu.dot_dimension_numbers<[1], [0], [0], [1], [0, 0, 1, 1], [], []>} : vector<2x256xf32>, vector<256x512xf32>, vector<2x512xf32> -> vector<2x512xf32>
    %c0_9 = arith.constant 0 : index
    %c0_10 = arith.constant 0 : index
    %10 = vector.load %arg4[%c0_9, %c0_10] : memref<1x512xf32, #tpu.memory_space<vmem>>, vector<1x512xf32>
    %11 = vector.broadcast %10 : vector<1x512xf32> to vector<2x512xf32>
    %12 = arith.addf %9, %11 : vector<2x512xf32>
    %cst_11 = arith.constant 0.000000e+00 : f32
    %13 = vector.broadcast %cst_11 : f32 to vector<2x512xf32>
    %14 = arith.maximumf %12, %13 : vector<2x512xf32>
    %15 = vector.extract_strided_slice %14 {offsets = [0, 0], sizes = [2, 128], strides = [1, 1]} : vector<2x512xf32> to vector<2x128xf32>
    %c0_12 = arith.constant 0 : index
    %c0_13 = arith.constant 0 : index
    %16 = vector.load %arg17[%c0_12, %c0_13] : memref<8x128xf32, #tpu.memory_space<vmem>>, vector<2x128xf32>
    tpu.vector_store %arg17[%c0_12, %c0_13], %15 {strides = array<i32>} : memref<8x128xf32, #tpu.memory_space<vmem>>, vector<2x128xf32>,
    %17 = vector.extract_strided_slice %14 {offsets = [0, 128], sizes = [2, 128], strides = [1, 1]} : vector<2x512xf32> to vector<2x128xf32>
    %c2 = arith.constant 2 : index
    %c0_14 = arith.constant 0 : index
    %18 = vector.load %arg17[%c2, %c0_14] : memref<8x128xf32, #tpu.memory_space<vmem>>, vector<2x128xf32>
    tpu.vector_store %arg17[%c2, %c0_14], %17 {strides = array<i32>} : memref<8x128xf32, #tpu.memory_space<vmem>>, vector<2x128xf32>,
    %19 = vector.extract_strided_slice %14 {offsets = [0, 256], sizes = [2, 128], strides = [1, 1]} : vector<2x512xf32> to vector<2x128xf32>
    %c4 = arith.constant 4 : index
    %c0_15 = arith.constant 0 : index
    %20 = vector.load %arg17[%c4, %c0_15] : memref<8x128xf32, #tpu.memory_space<vmem>>, vector<2x128xf32>
    tpu.vector_store %arg17[%c4, %c0_15], %19 {strides = array<i32>} : memref<8x128xf32, #tpu.memory_space<vmem>>, vector<2x128xf32>,
    %21 = vector.extract_strided_slice %14 {offsets = [0, 384], sizes = [2, 128], strides = [1, 1]} : vector<2x512xf32> to vector<2x128xf32>
    %c6 = arith.constant 6 : index
    %c0_16 = arith.constant 0 : index
    %22 = vector.load %arg17[%c6, %c0_16] : memref<8x128xf32, #tpu.memory_space<vmem>>, vector<2x128xf32>
    tpu.vector_store %arg17[%c6, %c0_16], %21 {strides = array<i32>} : memref<8x128xf32, #tpu.memory_space<vmem>>, vector<2x128xf32>,
    %c0_17 = arith.constant 0 : index
    %c0_18 = arith.constant 0 : index
    %23 = vector.load %arg17[%c0_17, %c0_18] : memref<8x128xf32, #tpu.memory_space<vmem>>, vector<8x128xf32>
    %c0_19 = arith.constant 0 : index
    %c0_20 = arith.constant 0 : index
    %24 = vector.load %arg12[%c0_19, %c0_20] : memref<9x128xf32, #tpu.memory_space<vmem>>, vector<9x128xf32>
    %c0_21 = arith.constant 0 : index
    %c0_22 = arith.constant 0 : index
    %25 = vector.load %arg13[%c0_21, %c0_22] : memref<9x512xf32, #tpu.memory_space<vmem>>, vector<9x512xf32>
    %c0_23 = arith.constant 0 : index
    %c0_24 = arith.constant 0 : index
    %c0_25 = arith.constant 0 : index
    %26 = vector.load %arg11[%c0_23, %c0_24, %c0_25] : memref<2x8x8xf32, #tpu.memory_space<vmem>>, vector<1x8x8xf32>
    %27 = vector.shape_cast %26 : vector<1x8x8xf32> to vector<8x8xf32>
    %c1 = arith.constant 1 : index
    %c0_26 = arith.constant 0 : index
    %c0_27 = arith.constant 0 : index
    %28 = vector.load %arg11[%c1, %c0_26, %c0_27] : memref<2x8x8xf32, #tpu.memory_space<vmem>>, vector<1x8x8xf32>
    %29 = vector.shape_cast %28 : vector<1x8x8xf32> to vector<8x8xf32>
    %c102_i32 = arith.constant 102 : i32
    %30 = tpu.dynamic_rotate %23 by %c102_i32 dim 1 : vector<8x128xf32>, i32 -> vector<8x128xf32>
    %31 = vector.extract_strided_slice %24 {offsets = [0, 0], sizes = [1, 128], strides = [1, 1]} : vector<9x128xf32> to vector<1x128xf32>
    %32 = vector.broadcast %31 : vector<1x128xf32> to vector<8x128xf32>
    %33 = arith.mulf %30, %32 : vector<8x128xf32>
    %c0_28 = arith.constant 0 : index
    %c0_29 = arith.constant 0 : index
    %34 = vector.load %arg18[%c0_28, %c0_29] : memref<72x512xf32, #tpu.memory_space<vmem>>, vector<8x128xf32>
    tpu.vector_store %arg18[%c0_28, %c0_29], %33 {strides = array<i32>} : memref<72x512xf32, #tpu.memory_space<vmem>>, vector<8x128xf32>,
    %c103_i32 = arith.constant 103 : i32
    %35 = tpu.dynamic_rotate %23 by %c103_i32 dim 1 : vector<8x128xf32>, i32 -> vector<8x128xf32>
    %36 = vector.extract_strided_slice %24 {offsets = [1, 0], sizes = [1, 128], strides = [1, 1]} : vector<9x128xf32> to vector<1x128xf32>
    %37 = vector.broadcast %36 : vector<1x128xf32> to vector<8x128xf32>
    %38 = arith.mulf %35, %37 : vector<8x128xf32>
    %c8 = arith.constant 8 : index
    %c0_30 = arith.constant 0 : index
    %39 = vector.load %arg18[%c8, %c0_30] : memref<72x512xf32, #tpu.memory_space<vmem>>, vector<8x128xf32>
    tpu.vector_store %arg18[%c8, %c0_30], %38 {strides = array<i32>} : memref<72x512xf32, #tpu.memory_space<vmem>>, vector<8x128xf32>,
    %c104_i32 = arith.constant 104 : i32
    %40 = tpu.dynamic_rotate %23 by %c104_i32 dim 1 : vector<8x128xf32>, i32 -> vector<8x128xf32>
    %41 = vector.extract_strided_slice %24 {offsets = [2, 0], sizes = [1, 128], strides = [1, 1]} : vector<9x128xf32> to vector<1x128xf32>
    %42 = vector.broadcast %41 : vector<1x128xf32> to vector<8x128xf32>
    %43 = arith.mulf %40, %42 : vector<8x128xf32>
    %c16 = arith.constant 16 : index
    %c0_31 = arith.constant 0 : index
    %44 = vector.load %arg18[%c16, %c0_31] : memref<72x512xf32, #tpu.memory_space<vmem>>, vector<8x128xf32>
    tpu.vector_store %arg18[%c16, %c0_31], %43 {strides = array<i32>} : memref<72x512xf32, #tpu.memory_space<vmem>>, vector<8x128xf32>,
    %c127_i32 = arith.constant 127 : i32
    %45 = tpu.dynamic_rotate %23 by %c127_i32 dim 1 : vector<8x128xf32>, i32 -> vector<8x128xf32>
    %46 = vector.extract_strided_slice %24 {offsets = [3, 0], sizes = [1, 128], strides = [1, 1]} : vector<9x128xf32> to vector<1x128xf32>
    %47 = vector.broadcast %46 : vector<1x128xf32> to vector<8x128xf32>
    %48 = arith.mulf %45, %47 : vector<8x128xf32>
    %c24 = arith.constant 24 : index
    %c0_32 = arith.constant 0 : index
    %49 = vector.load %arg18[%c24, %c0_32] : memref<72x512xf32, #tpu.memory_space<vmem>>, vector<8x128xf32>
    tpu.vector_store %arg18[%c24, %c0_32], %48 {strides = array<i32>} : memref<72x512xf32, #tpu.memory_space<vmem>>, vector<8x128xf32>,
    %50 = vector.extract_strided_slice %24 {offsets = [4, 0], sizes = [1, 128], strides = [1, 1]} : vector<9x128xf32> to vector<1x128xf32>
    %51 = vector.broadcast %50 : vector<1x128xf32> to vector<8x128xf32>
    %52 = arith.mulf %23, %51 : vector<8x128xf32>
    %c32 = arith.constant 32 : index
    %c0_33 = arith.constant 0 : index
    %53 = vector.load %arg18[%c32, %c0_33] : memref<72x512xf32, #tpu.memory_space<vmem>>, vector<8x128xf32>
    tpu.vector_store %arg18[%c32, %c0_33], %52 {strides = array<i32>} : memref<72x512xf32, #tpu.memory_space<vmem>>, vector<8x128xf32>,
    %c1_i32 = arith.constant 1 : i32
    %54 = tpu.dynamic_rotate %23 by %c1_i32 dim 1 : vector<8x128xf32>, i32 -> vector<8x128xf32>
    %55 = vector.extract_strided_slice %24 {offsets = [5, 0], sizes = [1, 128], strides = [1, 1]} : vector<9x128xf32> to vector<1x128xf32>
    %56 = vector.broadcast %55 : vector<1x128xf32> to vector<8x128xf32>
    %57 = arith.mulf %54, %56 : vector<8x128xf32>
    %c40 = arith.constant 40 : index
    %c0_34 = arith.constant 0 : index
    %58 = vector.load %arg18[%c40, %c0_34] : memref<72x512xf32, #tpu.memory_space<vmem>>, vector<8x128xf32>
    tpu.vector_store %arg18[%c40, %c0_34], %57 {strides = array<i32>} : memref<72x512xf32, #tpu.memory_space<vmem>>, vector<8x128xf32>,
    %c24_i32 = arith.constant 24 : i32
    %59 = tpu.dynamic_rotate %23 by %c24_i32 dim 1 : vector<8x128xf32>, i32 -> vector<8x128xf32>
    %60 = vector.extract_strided_slice %24 {offsets = [6, 0], sizes = [1, 128], strides = [1, 1]} : vector<9x128xf32> to vector<1x128xf32>
    %61 = vector.broadcast %60 : vector<1x128xf32> to vector<8x128xf32>
    %62 = arith.mulf %59, %61 : vector<8x128xf32>
    %c48 = arith.constant 48 : index
    %c0_35 = arith.constant 0 : index
    %63 = vector.load %arg18[%c48, %c0_35] : memref<72x512xf32, #tpu.memory_space<vmem>>, vector<8x128xf32>
    tpu.vector_store %arg18[%c48, %c0_35], %62 {strides = array<i32>} : memref<72x512xf32, #tpu.memory_space<vmem>>, vector<8x128xf32>,
    %c25_i32 = arith.constant 25 : i32
    %64 = tpu.dynamic_rotate %23 by %c25_i32 dim 1 : vector<8x128xf32>, i32 -> vector<8x128xf32>
    %65 = vector.extract_strided_slice %24 {offsets = [7, 0], sizes = [1, 128], strides = [1, 1]} : vector<9x128xf32> to vector<1x128xf32>
    %66 = vector.broadcast %65 : vector<1x128xf32> to vector<8x128xf32>
    %67 = arith.mulf %64, %66 : vector<8x128xf32>
    %c56 = arith.constant 56 : index
    %c0_36 = arith.constant 0 : index
    %68 = vector.load %arg18[%c56, %c0_36] : memref<72x512xf32, #tpu.memory_space<vmem>>, vector<8x128xf32>
    tpu.vector_store %arg18[%c56, %c0_36], %67 {strides = array<i32>} : memref<72x512xf32, #tpu.memory_space<vmem>>, vector<8x128xf32>,
    %c26_i32 = arith.constant 26 : i32
    %69 = tpu.dynamic_rotate %23 by %c26_i32 dim 1 : vector<8x128xf32>, i32 -> vector<8x128xf32>
    %70 = vector.extract_strided_slice %24 {offsets = [8, 0], sizes = [1, 128], strides = [1, 1]} : vector<9x128xf32> to vector<1x128xf32>
    %71 = vector.broadcast %70 : vector<1x128xf32> to vector<8x128xf32>
    %72 = arith.mulf %69, %71 : vector<8x128xf32>
    %c64 = arith.constant 64 : index
    %c0_37 = arith.constant 0 : index
    %73 = vector.load %arg18[%c64, %c0_37] : memref<72x512xf32, #tpu.memory_space<vmem>>, vector<8x128xf32>
    tpu.vector_store %arg18[%c64, %c0_37], %72 {strides = array<i32>} : memref<72x512xf32, #tpu.memory_space<vmem>>, vector<8x128xf32>,
    %c0_38 = arith.constant 0 : index
    %c0_39 = arith.constant 0 : index
    %74 = vector.load %arg18[%c0_38, %c0_39] : memref<72x512xf32, #tpu.memory_space<vmem>>, vector<72x128xf32>
    %c0_40 = arith.constant 0 : index
    %c0_41 = arith.constant 0 : index
    %75 = vector.load %arg5[%c0_40, %c0_41] : memref<8x72xf32, #tpu.memory_space<vmem>>, vector<8x72xf32>
    %cst_42 = arith.constant dense<0.000000e+00> : vector<8x128xf32>
    %76 = tpu.matmul %75, %74, %cst_42 {dimension_numbers = #tpu.dot_dimension_numbers<[1], [0], [0], [1], [0, 0, 1, 1], [], []>} : vector<8x72xf32>, vector<72x128xf32>, vector<8x128xf32> -> vector<8x128xf32>
    %c0_43 = arith.constant 0 : index
    %c0_44 = arith.constant 0 : index
    %c0_45 = arith.constant 0 : index
    %77 = vector.load %arg9[%c0_43, %c0_44, %c0_45] : memref<4x8x1xf32, #tpu.memory_space<vmem>>, vector<1x8x1xf32>
    %78 = vector.shape_cast %77 : vector<1x8x1xf32> to vector<8x1xf32>
    %c0_46 = arith.constant 0 : index
    %c0_47 = arith.constant 0 : index
    %c0_48 = arith.constant 0 : index
    %79 = vector.load %arg10[%c0_46, %c0_47, %c0_48] : memref<4x8x1xf32, #tpu.memory_space<vmem>>, vector<1x8x1xf32>
    %80 = vector.shape_cast %79 : vector<1x8x1xf32> to vector<8x1xf32>
    %cst_49 = arith.constant dense<0.000000e+00> : vector<8x128xf32>
    %81 = tpu.matmul %27, %76, %cst_49 {dimension_numbers = #tpu.dot_dimension_numbers<[1], [0], [0], [1], [0, 0, 1, 1], [], []>} : vector<8x8xf32>, vector<8x128xf32>, vector<8x128xf32> -> vector<8x128xf32>
    %cst_50 = arith.constant dense<0.000000e+00> : vector<8xf32>
    %82 = vector.multi_reduction <add>, %81, %cst_50 [1] : vector<8x128xf32> to vector<8xf32>
    %83 = vector.shape_cast %82 : vector<8xf32> to vector<8x1xf32>
    %84 = arith.mulf %76, %76 : vector<8x128xf32>
    %cst_51 = arith.constant dense<0.000000e+00> : vector<8x128xf32>
    %85 = tpu.matmul %27, %84, %cst_51 {dimension_numbers = #tpu.dot_dimension_numbers<[1], [0], [0], [1], [0, 0, 1, 1], [], []>} : vector<8x8xf32>, vector<8x128xf32>, vector<8x128xf32> -> vector<8x128xf32>
    %cst_52 = arith.constant dense<0.000000e+00> : vector<8xf32>
    %86 = vector.multi_reduction <add>, %85, %cst_52 [1] : vector<8x128xf32> to vector<8xf32>
    %87 = vector.shape_cast %86 : vector<8xf32> to vector<8x1xf32>
    %88 = arith.mulf %83, %83 : vector<8x1xf32>
    %89 = arith.subf %87, %88 : vector<8x1xf32>
    %cst_53 = arith.constant 9.99999974E-6 : f32
    %90 = vector.broadcast %cst_53 : f32 to vector<8x1xf32>
    %91 = arith.addf %89, %90 : vector<8x1xf32>
    %92 = math.rsqrt %91 : vector<8x1xf32>
    %93 = arith.mulf %92, %78 : vector<8x1xf32>
    %94 = vector.broadcast %83 : vector<8x1xf32> to vector<8x128xf32>
    %95 = arith.subf %76, %94 : vector<8x128xf32>
    %96 = vector.broadcast %93 : vector<8x1xf32> to vector<8x128xf32>
    %97 = arith.mulf %95, %96 : vector<8x128xf32>
    %98 = vector.broadcast %80 : vector<8x1xf32> to vector<8x128xf32>
    %99 = arith.addf %97, %98 : vector<8x128xf32>
    %cst_54 = arith.constant 0.000000e+00 : f32
    %100 = vector.broadcast %cst_54 : f32 to vector<8x128xf32>
    %101 = arith.maximumf %99, %100 : vector<8x128xf32>
    %c102_i32_55 = arith.constant 102 : i32
    %102 = tpu.dynamic_rotate %101 by %c102_i32_55 dim 1 : vector<8x128xf32>, i32 -> vector<8x128xf32>
    %103 = vector.extract_strided_slice %24 {offsets = [0, 0], sizes = [1, 128], strides = [1, 1]} : vector<9x128xf32> to vector<1x128xf32>
    %104 = vector.broadcast %103 : vector<1x128xf32> to vector<8x128xf32>
    %105 = arith.mulf %102, %104 : vector<8x128xf32>
    %c0_56 = arith.constant 0 : index
    %c0_57 = arith.constant 0 : index
    %106 = vector.load %arg18[%c0_56, %c0_57] : memref<72x512xf32, #tpu.memory_space<vmem>>, vector<8x128xf32>
    tpu.vector_store %arg18[%c0_56, %c0_57], %105 {strides = array<i32>} : memref<72x512xf32, #tpu.memory_space<vmem>>, vector<8x128xf32>,
    %c103_i32_58 = arith.constant 103 : i32
    %107 = tpu.dynamic_rotate %101 by %c103_i32_58 dim 1 : vector<8x128xf32>, i32 -> vector<8x128xf32>
    %108 = vector.extract_strided_slice %24 {offsets = [1, 0], sizes = [1, 128], strides = [1, 1]} : vector<9x128xf32> to vector<1x128xf32>
    %109 = vector.broadcast %108 : vector<1x128xf32> to vector<8x128xf32>
    %110 = arith.mulf %107, %109 : vector<8x128xf32>
    %c8_59 = arith.constant 8 : index
    %c0_60 = arith.constant 0 : index
    %111 = vector.load %arg18[%c8_59, %c0_60] : memref<72x512xf32, #tpu.memory_space<vmem>>, vector<8x128xf32>
    tpu.vector_store %arg18[%c8_59, %c0_60], %110 {strides = array<i32>} : memref<72x512xf32, #tpu.memory_space<vmem>>, vector<8x128xf32>,
    %c104_i32_61 = arith.constant 104 : i32
    %112 = tpu.dynamic_rotate %101 by %c104_i32_61 dim 1 : vector<8x128xf32>, i32 -> vector<8x128xf32>
    %113 = vector.extract_strided_slice %24 {offsets = [2, 0], sizes = [1, 128], strides = [1, 1]} : vector<9x128xf32> to vector<1x128xf32>
    %114 = vector.broadcast %113 : vector<1x128xf32> to vector<8x128xf32>
    %115 = arith.mulf %112, %114 : vector<8x128xf32>
    %c16_62 = arith.constant 16 : index
    %c0_63 = arith.constant 0 : index
    %116 = vector.load %arg18[%c16_62, %c0_63] : memref<72x512xf32, #tpu.memory_space<vmem>>, vector<8x128xf32>
    tpu.vector_store %arg18[%c16_62, %c0_63], %115 {strides = array<i32>} : memref<72x512xf32, #tpu.memory_space<vmem>>, vector<8x128xf32>,
    %c127_i32_64 = arith.constant 127 : i32
    %117 = tpu.dynamic_rotate %101 by %c127_i32_64 dim 1 : vector<8x128xf32>, i32 -> vector<8x128xf32>
    %118 = vector.extract_strided_slice %24 {offsets = [3, 0], sizes = [1, 128], strides = [1, 1]} : vector<9x128xf32> to vector<1x128xf32>
    %119 = vector.broadcast %118 : vector<1x128xf32> to vector<8x128xf32>
    %120 = arith.mulf %117, %119 : vector<8x128xf32>
    %c24_65 = arith.constant 24 : index
    %c0_66 = arith.constant 0 : index
    %121 = vector.load %arg18[%c24_65, %c0_66] : memref<72x512xf32, #tpu.memory_space<vmem>>, vector<8x128xf32>
    tpu.vector_store %arg18[%c24_65, %c0_66], %120 {strides = array<i32>} : memref<72x512xf32, #tpu.memory_space<vmem>>, vector<8x128xf32>,
    %122 = vector.extract_strided_slice %24 {offsets = [4, 0], sizes = [1, 128], strides = [1, 1]} : vector<9x128xf32> to vector<1x128xf32>
    %123 = vector.broadcast %122 : vector<1x128xf32> to vector<8x128xf32>
    %124 = arith.mulf %101, %123 : vector<8x128xf32>
    %c32_67 = arith.constant 32 : index
    %c0_68 = arith.constant 0 : index
    %125 = vector.load %arg18[%c32_67, %c0_68] : memref<72x512xf32, #tpu.memory_space<vmem>>, vector<8x128xf32>
    tpu.vector_store %arg18[%c32_67, %c0_68], %124 {strides = array<i32>} : memref<72x512xf32, #tpu.memory_space<vmem>>, vector<8x128xf32>,
    %c1_i32_69 = arith.constant 1 : i32
    %126 = tpu.dynamic_rotate %101 by %c1_i32_69 dim 1 : vector<8x128xf32>, i32 -> vector<8x128xf32>
    %127 = vector.extract_strided_slice %24 {offsets = [5, 0], sizes = [1, 128], strides = [1, 1]} : vector<9x128xf32> to vector<1x128xf32>
    %128 = vector.broadcast %127 : vector<1x128xf32> to vector<8x128xf32>
    %129 = arith.mulf %126, %128 : vector<8x128xf32>
    %c40_70 = arith.constant 40 : index
    %c0_71 = arith.constant 0 : index
    %130 = vector.load %arg18[%c40_70, %c0_71] : memref<72x512xf32, #tpu.memory_space<vmem>>, vector<8x128xf32>
    tpu.vector_store %arg18[%c40_70, %c0_71], %129 {strides = array<i32>} : memref<72x512xf32, #tpu.memory_space<vmem>>, vector<8x128xf32>,
    %c24_i32_72 = arith.constant 24 : i32
    %131 = tpu.dynamic_rotate %101 by %c24_i32_72 dim 1 : vector<8x128xf32>, i32 -> vector<8x128xf32>
    %132 = vector.extract_strided_slice %24 {offsets = [6, 0], sizes = [1, 128], strides = [1, 1]} : vector<9x128xf32> to vector<1x128xf32>
    %133 = vector.broadcast %132 : vector<1x128xf32> to vector<8x128xf32>
    %134 = arith.mulf %131, %133 : vector<8x128xf32>
    %c48_73 = arith.constant 48 : index
    %c0_74 = arith.constant 0 : index
    %135 = vector.load %arg18[%c48_73, %c0_74] : memref<72x512xf32, #tpu.memory_space<vmem>>, vector<8x128xf32>
    tpu.vector_store %arg18[%c48_73, %c0_74], %134 {strides = array<i32>} : memref<72x512xf32, #tpu.memory_space<vmem>>, vector<8x128xf32>,
    %c25_i32_75 = arith.constant 25 : i32
    %136 = tpu.dynamic_rotate %101 by %c25_i32_75 dim 1 : vector<8x128xf32>, i32 -> vector<8x128xf32>
    %137 = vector.extract_strided_slice %24 {offsets = [7, 0], sizes = [1, 128], strides = [1, 1]} : vector<9x128xf32> to vector<1x128xf32>
    %138 = vector.broadcast %137 : vector<1x128xf32> to vector<8x128xf32>
    %139 = arith.mulf %136, %138 : vector<8x128xf32>
    %c56_76 = arith.constant 56 : index
    %c0_77 = arith.constant 0 : index
    %140 = vector.load %arg18[%c56_76, %c0_77] : memref<72x512xf32, #tpu.memory_space<vmem>>, vector<8x128xf32>
    tpu.vector_store %arg18[%c56_76, %c0_77], %139 {strides = array<i32>} : memref<72x512xf32, #tpu.memory_space<vmem>>, vector<8x128xf32>,
    %c26_i32_78 = arith.constant 26 : i32
    %141 = tpu.dynamic_rotate %101 by %c26_i32_78 dim 1 : vector<8x128xf32>, i32 -> vector<8x128xf32>
    %142 = vector.extract_strided_slice %24 {offsets = [8, 0], sizes = [1, 128], strides = [1, 1]} : vector<9x128xf32> to vector<1x128xf32>
    %143 = vector.broadcast %142 : vector<1x128xf32> to vector<8x128xf32>
    %144 = arith.mulf %141, %143 : vector<8x128xf32>
    %c64_79 = arith.constant 64 : index
    %c0_80 = arith.constant 0 : index
    %145 = vector.load %arg18[%c64_79, %c0_80] : memref<72x512xf32, #tpu.memory_space<vmem>>, vector<8x128xf32>
    tpu.vector_store %arg18[%c64_79, %c0_80], %144 {strides = array<i32>} : memref<72x512xf32, #tpu.memory_space<vmem>>, vector<8x128xf32>,
    %c0_81 = arith.constant 0 : index
    %c0_82 = arith.constant 0 : index
    %146 = vector.load %arg18[%c0_81, %c0_82] : memref<72x512xf32, #tpu.memory_space<vmem>>, vector<72x128xf32>
    %c0_83 = arith.constant 0 : index
    %c0_84 = arith.constant 0 : index
    %147 = vector.load %arg6[%c0_83, %c0_84] : memref<8x72xf32, #tpu.memory_space<vmem>>, vector<8x72xf32>
    %cst_85 = arith.constant dense<0.000000e+00> : vector<8x128xf32>
    %148 = tpu.matmul %147, %146, %cst_85 {dimension_numbers = #tpu.dot_dimension_numbers<[1], [0], [0], [1], [0, 0, 1, 1], [], []>} : vector<8x72xf32>, vector<72x128xf32>, vector<8x128xf32> -> vector<8x128xf32>
    %c1_86 = arith.constant 1 : index
    %c0_87 = arith.constant 0 : index
    %c0_88 = arith.constant 0 : index
    %149 = vector.load %arg9[%c1_86, %c0_87, %c0_88] : memref<4x8x1xf32, #tpu.memory_space<vmem>>, vector<1x8x1xf32>
    %150 = vector.shape_cast %149 : vector<1x8x1xf32> to vector<8x1xf32>
    %c1_89 = arith.constant 1 : index
    %c0_90 = arith.constant 0 : index
    %c0_91 = arith.constant 0 : index
    %151 = vector.load %arg10[%c1_89, %c0_90, %c0_91] : memref<4x8x1xf32, #tpu.memory_space<vmem>>, vector<1x8x1xf32>
    %152 = vector.shape_cast %151 : vector<1x8x1xf32> to vector<8x1xf32>
    %cst_92 = arith.constant dense<0.000000e+00> : vector<8x128xf32>
    %153 = tpu.matmul %27, %148, %cst_92 {dimension_numbers = #tpu.dot_dimension_numbers<[1], [0], [0], [1], [0, 0, 1, 1], [], []>} : vector<8x8xf32>, vector<8x128xf32>, vector<8x128xf32> -> vector<8x128xf32>
    %cst_93 = arith.constant dense<0.000000e+00> : vector<8xf32>
    %154 = vector.multi_reduction <add>, %153, %cst_93 [1] : vector<8x128xf32> to vector<8xf32>
    %155 = vector.shape_cast %154 : vector<8xf32> to vector<8x1xf32>
    %156 = arith.mulf %148, %148 : vector<8x128xf32>
    %cst_94 = arith.constant dense<0.000000e+00> : vector<8x128xf32>
    %157 = tpu.matmul %27, %156, %cst_94 {dimension_numbers = #tpu.dot_dimension_numbers<[1], [0], [0], [1], [0, 0, 1, 1], [], []>} : vector<8x8xf32>, vector<8x128xf32>, vector<8x128xf32> -> vector<8x128xf32>
    %cst_95 = arith.constant dense<0.000000e+00> : vector<8xf32>
    %158 = vector.multi_reduction <add>, %157, %cst_95 [1] : vector<8x128xf32> to vector<8xf32>
    %159 = vector.shape_cast %158 : vector<8xf32> to vector<8x1xf32>
    %160 = arith.mulf %155, %155 : vector<8x1xf32>
    %161 = arith.subf %159, %160 : vector<8x1xf32>
    %cst_96 = arith.constant 9.99999974E-6 : f32
    %162 = vector.broadcast %cst_96 : f32 to vector<8x1xf32>
    %163 = arith.addf %161, %162 : vector<8x1xf32>
    %164 = math.rsqrt %163 : vector<8x1xf32>
    %165 = arith.mulf %164, %150 : vector<8x1xf32>
    %166 = vector.broadcast %155 : vector<8x1xf32> to vector<8x128xf32>
    %167 = arith.subf %148, %166 : vector<8x128xf32>
    %168 = vector.broadcast %165 : vector<8x1xf32> to vector<8x128xf32>
    %169 = arith.mulf %167, %168 : vector<8x128xf32>
    %170 = vector.broadcast %152 : vector<8x1xf32> to vector<8x128xf32>
    %171 = arith.addf %169, %170 : vector<8x128xf32>
    %cst_97 = arith.constant 0.000000e+00 : f32
    %172 = vector.broadcast %cst_97 : f32 to vector<8x128xf32>
    %173 = arith.maximumf %171, %172 : vector<8x128xf32>
    %c0_98 = arith.constant 0 : index
    %c0_99 = arith.constant 0 : index
    %174 = vector.load %arg15[%c0_98, %c0_99] : memref<128x512xf32, #tpu.memory_space<vmem>>, vector<128x512xf32>
    %cst_100 = arith.constant dense<0.000000e+00> : vector<8x512xf32>
    %175 = tpu.matmul %173, %174, %cst_100 {dimension_numbers = #tpu.dot_dimension_numbers<[1], [0], [0], [1], [0, 0, 1, 1], [], []>} : vector<8x128xf32>, vector<128x512xf32>, vector<8x512xf32> -> vector<8x512xf32>
    %c0_101 = arith.constant 0 : index
    %c0_102 = arith.constant 0 : index
    %176 = vector.load %arg14[%c0_101, %c0_102] : memref<4x512xf32, #tpu.memory_space<vmem>>, vector<4x512xf32>
    %177 = vector.extract_strided_slice %176 {offsets = [0, 0], sizes = [1, 512], strides = [1, 1]} : vector<4x512xf32> to vector<1x512xf32>
    %178 = vector.broadcast %177 : vector<1x512xf32> to vector<8x512xf32>
    %179 = arith.mulf %175, %178 : vector<8x512xf32>
    %c0_103 = arith.constant 0 : index
    %c0_104 = arith.constant 0 : index
    %180 = vector.load %arg18[%c0_103, %c0_104] : memref<72x512xf32, #tpu.memory_space<vmem>>, vector<8x512xf32>
    tpu.vector_store %arg18[%c0_103, %c0_104], %179 {strides = array<i32>} : memref<72x512xf32, #tpu.memory_space<vmem>>, vector<8x512xf32>,
    %181 = vector.extract_strided_slice %176 {offsets = [1, 0], sizes = [1, 512], strides = [1, 1]} : vector<4x512xf32> to vector<1x512xf32>
    %182 = vector.broadcast %181 : vector<1x512xf32> to vector<8x512xf32>
    %183 = arith.mulf %175, %182 : vector<8x512xf32>
    %c8_105 = arith.constant 8 : index
    %c0_106 = arith.constant 0 : index
    %184 = vector.load %arg18[%c8_105, %c0_106] : memref<72x512xf32, #tpu.memory_space<vmem>>, vector<8x512xf32>
    tpu.vector_store %arg18[%c8_105, %c0_106], %183 {strides = array<i32>} : memref<72x512xf32, #tpu.memory_space<vmem>>, vector<8x512xf32>,
    %185 = vector.extract_strided_slice %176 {offsets = [2, 0], sizes = [1, 512], strides = [1, 1]} : vector<4x512xf32> to vector<1x512xf32>
    %186 = vector.broadcast %185 : vector<1x512xf32> to vector<8x512xf32>
    %187 = arith.mulf %175, %186 : vector<8x512xf32>
    %c16_107 = arith.constant 16 : index
    %c0_108 = arith.constant 0 : index
    %188 = vector.load %arg18[%c16_107, %c0_108] : memref<72x512xf32, #tpu.memory_space<vmem>>, vector<8x512xf32>
    tpu.vector_store %arg18[%c16_107, %c0_108], %187 {strides = array<i32>} : memref<72x512xf32, #tpu.memory_space<vmem>>, vector<8x512xf32>,
    %189 = vector.extract_strided_slice %176 {offsets = [3, 0], sizes = [1, 512], strides = [1, 1]} : vector<4x512xf32> to vector<1x512xf32>
    %190 = vector.broadcast %189 : vector<1x512xf32> to vector<8x512xf32>
    %191 = arith.mulf %175, %190 : vector<8x512xf32>
    %c24_109 = arith.constant 24 : index
    %c0_110 = arith.constant 0 : index
    %192 = vector.load %arg18[%c24_109, %c0_110] : memref<72x512xf32, #tpu.memory_space<vmem>>, vector<8x512xf32>
    tpu.vector_store %arg18[%c24_109, %c0_110], %191 {strides = array<i32>} : memref<72x512xf32, #tpu.memory_space<vmem>>, vector<8x512xf32>,
    %c0_111 = arith.constant 0 : index
    %c0_112 = arith.constant 0 : index
    %193 = vector.load %arg7[%c0_111, %c0_112] : memref<8x32xf32, #tpu.memory_space<vmem>>, vector<8x32xf32>
    %c0_113 = arith.constant 0 : index
    %c0_114 = arith.constant 0 : index
    %194 = vector.load %arg18[%c0_113, %c0_114] : memref<72x512xf32, #tpu.memory_space<vmem>>, vector<32x512xf32>
    %cst_115 = arith.constant dense<0.000000e+00> : vector<8x512xf32>
    %195 = tpu.matmul %193, %194, %cst_115 {dimension_numbers = #tpu.dot_dimension_numbers<[1], [0], [0], [1], [0, 0, 1, 1], [], []>} : vector<8x32xf32>, vector<32x512xf32>, vector<8x512xf32> -> vector<8x512xf32>
    %c2_116 = arith.constant 2 : index
    %c0_117 = arith.constant 0 : index
    %c0_118 = arith.constant 0 : index
    %196 = vector.load %arg9[%c2_116, %c0_117, %c0_118] : memref<4x8x1xf32, #tpu.memory_space<vmem>>, vector<1x8x1xf32>
    %197 = vector.shape_cast %196 : vector<1x8x1xf32> to vector<8x1xf32>
    %c2_119 = arith.constant 2 : index
    %c0_120 = arith.constant 0 : index
    %c0_121 = arith.constant 0 : index
    %198 = vector.load %arg10[%c2_119, %c0_120, %c0_121] : memref<4x8x1xf32, #tpu.memory_space<vmem>>, vector<1x8x1xf32>
    %199 = vector.shape_cast %198 : vector<1x8x1xf32> to vector<8x1xf32>
    %cst_122 = arith.constant dense<0.000000e+00> : vector<8x512xf32>
    %200 = tpu.matmul %29, %195, %cst_122 {dimension_numbers = #tpu.dot_dimension_numbers<[1], [0], [0], [1], [0, 0, 1, 1], [], []>} : vector<8x8xf32>, vector<8x512xf32>, vector<8x512xf32> -> vector<8x512xf32>
    %cst_123 = arith.constant dense<0.000000e+00> : vector<8xf32>
    %201 = vector.multi_reduction <add>, %200, %cst_123 [1] : vector<8x512xf32> to vector<8xf32>
    %202 = vector.shape_cast %201 : vector<8xf32> to vector<8x1xf32>
    %203 = arith.mulf %195, %195 : vector<8x512xf32>
    %cst_124 = arith.constant dense<0.000000e+00> : vector<8x512xf32>
    %204 = tpu.matmul %29, %203, %cst_124 {dimension_numbers = #tpu.dot_dimension_numbers<[1], [0], [0], [1], [0, 0, 1, 1], [], []>} : vector<8x8xf32>, vector<8x512xf32>, vector<8x512xf32> -> vector<8x512xf32>
    %cst_125 = arith.constant dense<0.000000e+00> : vector<8xf32>
    %205 = vector.multi_reduction <add>, %204, %cst_125 [1] : vector<8x512xf32> to vector<8xf32>
    %206 = vector.shape_cast %205 : vector<8xf32> to vector<8x1xf32>
    %207 = arith.mulf %202, %202 : vector<8x1xf32>
    %208 = arith.subf %206, %207 : vector<8x1xf32>
    %cst_126 = arith.constant 9.99999974E-6 : f32
    %209 = vector.broadcast %cst_126 : f32 to vector<8x1xf32>
    %210 = arith.addf %208, %209 : vector<8x1xf32>
    %211 = math.rsqrt %210 : vector<8x1xf32>
    %212 = arith.mulf %211, %197 : vector<8x1xf32>
    %213 = vector.broadcast %202 : vector<8x1xf32> to vector<8x512xf32>
    %214 = arith.subf %195, %213 : vector<8x512xf32>
    %215 = vector.broadcast %212 : vector<8x1xf32> to vector<8x512xf32>
    %216 = arith.mulf %214, %215 : vector<8x512xf32>
    %217 = vector.broadcast %199 : vector<8x1xf32> to vector<8x512xf32>
    %218 = arith.addf %216, %217 : vector<8x512xf32>
    %cst_127 = arith.constant 0.000000e+00 : f32
    %219 = vector.broadcast %cst_127 : f32 to vector<8x512xf32>
    %220 = arith.maximumf %218, %219 : vector<8x512xf32>
    %c461_i32 = arith.constant 461 : i32
    %221 = tpu.dynamic_rotate %220 by %c461_i32 dim 1 : vector<8x512xf32>, i32 -> vector<8x512xf32>
    %222 = vector.extract_strided_slice %25 {offsets = [0, 0], sizes = [1, 512], strides = [1, 1]} : vector<9x512xf32> to vector<1x512xf32>
    %223 = vector.broadcast %222 : vector<1x512xf32> to vector<8x512xf32>
    %224 = arith.mulf %221, %223 : vector<8x512xf32>
    %c0_128 = arith.constant 0 : index
    %c0_129 = arith.constant 0 : index
    %225 = vector.load %arg18[%c0_128, %c0_129] : memref<72x512xf32, #tpu.memory_space<vmem>>, vector<8x512xf32>
    tpu.vector_store %arg18[%c0_128, %c0_129], %224 {strides = array<i32>} : memref<72x512xf32, #tpu.memory_space<vmem>>, vector<8x512xf32>,
    %c462_i32 = arith.constant 462 : i32
    %226 = tpu.dynamic_rotate %220 by %c462_i32 dim 1 : vector<8x512xf32>, i32 -> vector<8x512xf32>
    %227 = vector.extract_strided_slice %25 {offsets = [1, 0], sizes = [1, 512], strides = [1, 1]} : vector<9x512xf32> to vector<1x512xf32>
    %228 = vector.broadcast %227 : vector<1x512xf32> to vector<8x512xf32>
    %229 = arith.mulf %226, %228 : vector<8x512xf32>
    %c8_130 = arith.constant 8 : index
    %c0_131 = arith.constant 0 : index
    %230 = vector.load %arg18[%c8_130, %c0_131] : memref<72x512xf32, #tpu.memory_space<vmem>>, vector<8x512xf32>
    tpu.vector_store %arg18[%c8_130, %c0_131], %229 {strides = array<i32>} : memref<72x512xf32, #tpu.memory_space<vmem>>, vector<8x512xf32>,
    %c463_i32 = arith.constant 463 : i32
    %231 = tpu.dynamic_rotate %220 by %c463_i32 dim 1 : vector<8x512xf32>, i32 -> vector<8x512xf32>
    %232 = vector.extract_strided_slice %25 {offsets = [2, 0], sizes = [1, 512], strides = [1, 1]} : vector<9x512xf32> to vector<1x512xf32>
    %233 = vector.broadcast %232 : vector<1x512xf32> to vector<8x512xf32>
    %234 = arith.mulf %231, %233 : vector<8x512xf32>
    %c16_132 = arith.constant 16 : index
    %c0_133 = arith.constant 0 : index
    %235 = vector.load %arg18[%c16_132, %c0_133] : memref<72x512xf32, #tpu.memory_space<vmem>>, vector<8x512xf32>
    tpu.vector_store %arg18[%c16_132, %c0_133], %234 {strides = array<i32>} : memref<72x512xf32, #tpu.memory_space<vmem>>, vector<8x512xf32>,
    %c511_i32 = arith.constant 511 : i32
    %236 = tpu.dynamic_rotate %220 by %c511_i32 dim 1 : vector<8x512xf32>, i32 -> vector<8x512xf32>
    %237 = vector.extract_strided_slice %25 {offsets = [3, 0], sizes = [1, 512], strides = [1, 1]} : vector<9x512xf32> to vector<1x512xf32>
    %238 = vector.broadcast %237 : vector<1x512xf32> to vector<8x512xf32>
    %239 = arith.mulf %236, %238 : vector<8x512xf32>
    %c24_134 = arith.constant 24 : index
    %c0_135 = arith.constant 0 : index
    %240 = vector.load %arg18[%c24_134, %c0_135] : memref<72x512xf32, #tpu.memory_space<vmem>>, vector<8x512xf32>
    tpu.vector_store %arg18[%c24_134, %c0_135], %239 {strides = array<i32>} : memref<72x512xf32, #tpu.memory_space<vmem>>, vector<8x512xf32>,
    %241 = vector.extract_strided_slice %25 {offsets = [4, 0], sizes = [1, 512], strides = [1, 1]} : vector<9x512xf32> to vector<1x512xf32>
    %242 = vector.broadcast %241 : vector<1x512xf32> to vector<8x512xf32>
    %243 = arith.mulf %220, %242 : vector<8x512xf32>
    %c32_136 = arith.constant 32 : index
    %c0_137 = arith.constant 0 : index
    %244 = vector.load %arg18[%c32_136, %c0_137] : memref<72x512xf32, #tpu.memory_space<vmem>>, vector<8x512xf32>
    tpu.vector_store %arg18[%c32_136, %c0_137], %243 {strides = array<i32>} : memref<72x512xf32, #tpu.memory_space<vmem>>, vector<8x512xf32>,
    %c1_i32_138 = arith.constant 1 : i32
    %245 = tpu.dynamic_rotate %220 by %c1_i32_138 dim 1 : vector<8x512xf32>, i32 -> vector<8x512xf32>
    %246 = vector.extract_strided_slice %25 {offsets = [5, 0], sizes = [1, 512], strides = [1, 1]} : vector<9x512xf32> to vector<1x512xf32>
    %247 = vector.broadcast %246 : vector<1x512xf32> to vector<8x512xf32>
    %248 = arith.mulf %245, %247 : vector<8x512xf32>
    %c40_139 = arith.constant 40 : index
    %c0_140 = arith.constant 0 : index
    %249 = vector.load %arg18[%c40_139, %c0_140] : memref<72x512xf32, #tpu.memory_space<vmem>>, vector<8x512xf32>
    tpu.vector_store %arg18[%c40_139, %c0_140], %248 {strides = array<i32>} : memref<72x512xf32, #tpu.memory_space<vmem>>, vector<8x512xf32>,
    %c49_i32 = arith.constant 49 : i32
    %250 = tpu.dynamic_rotate %220 by %c49_i32 dim 1 : vector<8x512xf32>, i32 -> vector<8x512xf32>
    %251 = vector.extract_strided_slice %25 {offsets = [6, 0], sizes = [1, 512], strides = [1, 1]} : vector<9x512xf32> to vector<1x512xf32>
    %252 = vector.broadcast %251 : vector<1x512xf32> to vector<8x512xf32>
    %253 = arith.mulf %250, %252 : vector<8x512xf32>
    %c48_141 = arith.constant 48 : index
    %c0_142 = arith.constant 0 : index
    %254 = vector.load %arg18[%c48_141, %c0_142] : memref<72x512xf32, #tpu.memory_space<vmem>>, vector<8x512xf32>
    tpu.vector_store %arg18[%c48_141, %c0_142], %253 {strides = array<i32>} : memref<72x512xf32, #tpu.memory_space<vmem>>, vector<8x512xf32>,
    %c50_i32 = arith.constant 50 : i32
    %255 = tpu.dynamic_rotate %220 by %c50_i32 dim 1 : vector<8x512xf32>, i32 -> vector<8x512xf32>
    %256 = vector.extract_strided_slice %25 {offsets = [7, 0], sizes = [1, 512], strides = [1, 1]} : vector<9x512xf32> to vector<1x512xf32>
    %257 = vector.broadcast %256 : vector<1x512xf32> to vector<8x512xf32>
    %258 = arith.mulf %255, %257 : vector<8x512xf32>
    %c56_143 = arith.constant 56 : index
    %c0_144 = arith.constant 0 : index
    %259 = vector.load %arg18[%c56_143, %c0_144] : memref<72x512xf32, #tpu.memory_space<vmem>>, vector<8x512xf32>
    tpu.vector_store %arg18[%c56_143, %c0_144], %258 {strides = array<i32>} : memref<72x512xf32, #tpu.memory_space<vmem>>, vector<8x512xf32>,
    %c51_i32 = arith.constant 51 : i32
    %260 = tpu.dynamic_rotate %220 by %c51_i32 dim 1 : vector<8x512xf32>, i32 -> vector<8x512xf32>
    %261 = vector.extract_strided_slice %25 {offsets = [8, 0], sizes = [1, 512], strides = [1, 1]} : vector<9x512xf32> to vector<1x512xf32>
    %262 = vector.broadcast %261 : vector<1x512xf32> to vector<8x512xf32>
    %263 = arith.mulf %260, %262 : vector<8x512xf32>
    %c64_145 = arith.constant 64 : index
    %c0_146 = arith.constant 0 : index
    %264 = vector.load %arg18[%c64_145, %c0_146] : memref<72x512xf32, #tpu.memory_space<vmem>>, vector<8x512xf32>
    tpu.vector_store %arg18[%c64_145, %c0_146], %263 {strides = array<i32>} : memref<72x512xf32, #tpu.memory_space<vmem>>, vector<8x512xf32>,
    %c0_147 = arith.constant 0 : index
    %c0_148 = arith.constant 0 : index
    %265 = vector.load %arg18[%c0_147, %c0_148] : memref<72x512xf32, #tpu.memory_space<vmem>>, vector<72x512xf32>
    %c0_149 = arith.constant 0 : index
    %c0_150 = arith.constant 0 : index
    %266 = vector.load %arg8[%c0_149, %c0_150] : memref<8x72xf32, #tpu.memory_space<vmem>>, vector<8x72xf32>
    %cst_151 = arith.constant dense<0.000000e+00> : vector<8x512xf32>
    %267 = tpu.matmul %266, %265, %cst_151 {dimension_numbers = #tpu.dot_dimension_numbers<[1], [0], [0], [1], [0, 0, 1, 1], [], []>} : vector<8x72xf32>, vector<72x512xf32>, vector<8x512xf32> -> vector<8x512xf32>
    %c3 = arith.constant 3 : index
    %c0_152 = arith.constant 0 : index
    %c0_153 = arith.constant 0 : index
    %268 = vector.load %arg9[%c3, %c0_152, %c0_153] : memref<4x8x1xf32, #tpu.memory_space<vmem>>, vector<1x8x1xf32>
    %269 = vector.shape_cast %268 : vector<1x8x1xf32> to vector<8x1xf32>
    %c3_154 = arith.constant 3 : index
    %c0_155 = arith.constant 0 : index
    %c0_156 = arith.constant 0 : index
    %270 = vector.load %arg10[%c3_154, %c0_155, %c0_156] : memref<4x8x1xf32, #tpu.memory_space<vmem>>, vector<1x8x1xf32>
    %271 = vector.shape_cast %270 : vector<1x8x1xf32> to vector<8x1xf32>
    %cst_157 = arith.constant dense<0.000000e+00> : vector<8x512xf32>
    %272 = tpu.matmul %29, %267, %cst_157 {dimension_numbers = #tpu.dot_dimension_numbers<[1], [0], [0], [1], [0, 0, 1, 1], [], []>} : vector<8x8xf32>, vector<8x512xf32>, vector<8x512xf32> -> vector<8x512xf32>
    %cst_158 = arith.constant dense<0.000000e+00> : vector<8xf32>
    %273 = vector.multi_reduction <add>, %272, %cst_158 [1] : vector<8x512xf32> to vector<8xf32>
    %274 = vector.shape_cast %273 : vector<8xf32> to vector<8x1xf32>
    %275 = arith.mulf %267, %267 : vector<8x512xf32>
    %cst_159 = arith.constant dense<0.000000e+00> : vector<8x512xf32>
    %276 = tpu.matmul %29, %275, %cst_159 {dimension_numbers = #tpu.dot_dimension_numbers<[1], [0], [0], [1], [0, 0, 1, 1], [], []>} : vector<8x8xf32>, vector<8x512xf32>, vector<8x512xf32> -> vector<8x512xf32>
    %cst_160 = arith.constant dense<0.000000e+00> : vector<8xf32>
    %277 = vector.multi_reduction <add>, %276, %cst_160 [1] : vector<8x512xf32> to vector<8xf32>
    %278 = vector.shape_cast %277 : vector<8xf32> to vector<8x1xf32>
    %279 = arith.mulf %274, %274 : vector<8x1xf32>
    %280 = arith.subf %278, %279 : vector<8x1xf32>
    %cst_161 = arith.constant 9.99999974E-6 : f32
    %281 = vector.broadcast %cst_161 : f32 to vector<8x1xf32>
    %282 = arith.addf %280, %281 : vector<8x1xf32>
    %283 = math.rsqrt %282 : vector<8x1xf32>
    %284 = arith.mulf %283, %269 : vector<8x1xf32>
    %285 = vector.broadcast %274 : vector<8x1xf32> to vector<8x512xf32>
    %286 = arith.subf %267, %285 : vector<8x512xf32>
    %287 = vector.broadcast %284 : vector<8x1xf32> to vector<8x512xf32>
    %288 = arith.mulf %286, %287 : vector<8x512xf32>
    %289 = vector.broadcast %271 : vector<8x1xf32> to vector<8x512xf32>
    %290 = arith.addf %288, %289 : vector<8x512xf32>
    %cst_162 = arith.constant 0.000000e+00 : f32
    %291 = vector.broadcast %cst_162 : f32 to vector<8x512xf32>
    %292 = arith.maximumf %290, %291 : vector<8x512xf32>
    %c0_163 = arith.constant 0 : index
    %c0_164 = arith.constant 0 : index
    %293 = vector.load %arg16[%c0_163, %c0_164] : memref<8x512xf32, #tpu.memory_space<vmem>>, vector<8x512xf32>
    tpu.vector_store %arg16[%c0_163, %c0_164], %292 {strides = array<i32>} : memref<8x512xf32, #tpu.memory_space<vmem>>, vector<8x512xf32>,
    return
  }
}

</mosaic_0001>

<llo_original>
// kernel: decoder_forward.1
$region0: #{decoder_forward.1}
  #allocation0 [shape = 'u32[]', space=smem, size = 0x4, offset = 0x4, fixed_abs, tag = 'smem constant byte address 0x4 - core index']
  #allocation1 [shape = 'u32[72,128]{1,0:T(1,128)}', space=vmem, size = 0x9000, scoped, tag = 'internal scratch']
  #allocation2 [shape = 'f32[8,128]{1,0:T(8,128)}', space=vmem, size = 0x1000, scoped, tag = 'scratch operand']
  #allocation3 [shape = 'f32[72,512]{1,0:T(8,128)}', space=vmem, size = 0x24000, scoped, tag = 'scratch operand']
  %s0 = inlined_call_operand.vmem [shape: f32[2,32], index: 0, kind: input, shape index: {}]
  %s1 = inlined_call_operand.vmem [shape: f32[32,256], index: 1, kind: input, shape index: {}]
  %s2 = inlined_call_operand.hbm [shape: f32[1,256], index: 2, kind: input, shape index: {}]
  %s3 = inlined_call_operand.hbm [shape: f32[256,512], index: 3, kind: input, shape index: {}]
  %s4 = inlined_call_operand.hbm [shape: f32[1,512], index: 4, kind: input, shape index: {}]
  %s5 = inlined_call_operand.vmem [shape: f32[8,72], index: 5, kind: input, shape index: {}]
  %s6 = inlined_call_operand.hbm [shape: f32[8,72], index: 6, kind: input, shape index: {}]
  %s7 = inlined_call_operand.vmem [shape: f32[8,32], index: 7, kind: input, shape index: {}]
  %s8 = inlined_call_operand.hbm [shape: f32[8,72], index: 8, kind: input, shape index: {}]
  %s9 = inlined_call_operand.vmem [shape: f32[4,8,1], index: 9, kind: input, shape index: {}]
  %s10 = inlined_call_operand.vmem [shape: f32[4,8,1], index: 10, kind: input, shape index: {}]
  %s11 = inlined_call_operand.hbm [shape: f32[2,8,8], index: 11, kind: input, shape index: {}]
  %s12 = inlined_call_operand.hbm [shape: f32[9,128], index: 12, kind: input, shape index: {}]
  %s13 = inlined_call_operand.hbm [shape: f32[9,512], index: 13, kind: input, shape index: {}]
  %s14 = inlined_call_operand.hbm [shape: f32[4,512], index: 14, kind: input, shape index: {}]
  %s15 = inlined_call_operand.hbm [shape: f32[128,512], index: 15, kind: input, shape index: {}]
  %s16 = inlined_call_operand.vmem [shape: f32[8,512], index: 16, kind: output, shape index: {}]
  %s17 = sld [smem:[#allocation0]]
  $region114: #{decoder_forward.1} parent=0
    _
  %s19 = ssub.s32 1, %s17
  %s20 = scalar_select 0, %s19, %s17
  $region1: #{decoder_forward.1} parent=0
    #allocation4 [shape = 'u8[1024]{0}', space=vmem, size = 0x400, scoped, tag = 'input window, operand 2, single buffered']
    #allocation5 [shape = 's32[1]{0}', space=sflag, size = 0x4, scoped, tag = 'scoped memory for decoder_forward.1']
    #allocation6 [shape = 'u8[524288]{0}', space=vmem, size = 0x80000, scoped, tag = 'input window, operand 3, single buffered']
    #allocation7 [shape = 's32[1]{0}', space=sflag, size = 0x4, scoped, tag = 'scoped memory for decoder_forward.1']
    #allocation8 [shape = 'u8[2048]{0}', space=vmem, size = 0x800, scoped, tag = 'input window, operand 4, single buffered']
    #allocation9 [shape = 'u8[4096]{0}', space=vmem, size = 0x1000, scoped, tag = 'input window, operand 6, single buffered']
    #allocation10 [shape = 's32[1]{0}', space=sflag, size = 0x4, scoped, tag = 'scoped memory for decoder_forward.1']
    #allocation11 [shape = 'u8[4096]{0}', space=vmem, size = 0x1000, scoped, tag = 'input window, operand 8, single buffered']
    #allocation12 [shape = 'u8[8192]{0}', space=vmem, size = 0x2000, scoped, tag = 'input window, operand 11, single buffered']
    #allocation13 [shape = 's32[1]{0}', space=sflag, size = 0x4, scoped, tag = 'scoped memory for decoder_forward.1']
    #allocation14 [shape = 'u8[8192]{0}', space=vmem, size = 0x2000, scoped, tag = 'input window, operand 12, single buffered']
    #allocation15 [shape = 'u8[32768]{0}', space=vmem, size = 0x8000, scoped, tag = 'input window, operand 13, single buffered']
    #allocation16 [shape = 's32[1]{0}', space=sflag, size = 0x4, scoped, tag = 'scoped memory for decoder_forward.1']
    #allocation17 [shape = 'u8[8192]{0}', space=vmem, size = 0x2000, scoped, tag = 'input window, operand 14, single buffered']
    #allocation18 [shape = 'u8[262144]{0}', space=vmem, size = 0x40000, scoped, tag = 'input window, operand 15, single buffered']
    #allocation19 [shape = 's32[1]{0}', space=sflag, size = 0x4, scoped, tag = 'scoped memory for decoder_forward.1']
    %21 = vsyncpa [#allocation5], 0
    %22 = vsyncpa [#allocation7], 0
    %23 = vsyncpa [#allocation10], 0
    %24 = vsyncpa [#allocation13], 0
    %25 = vsyncpa [#allocation16], 0
    %26 = vsyncpa [#allocation19], 0
    // Predicated region
    $region2: #{decoder_forward.1} parent=1 // pred_check
      _
    $region3: #{decoder_forward.1} parent=1 // pred_check_branch
      %28 = sbr.rel (0) target = $region5
    $region4: #{decoder_forward.1} parent=1 // pred_region
      _
    $region5: #{decoder_forward.1} parent=1 // pred_fallthru
      _
    // Predicated region
    $region6: #{decoder_forward.1} parent=1 // pred_check
      _
    $region7: #{decoder_forward.1} parent=1 // pred_check_branch
      %30 = sbr.rel (0) target = $region9
    $region8: #{decoder_forward.1} parent=1 // pred_region
      _
    $region9: #{decoder_forward.1} parent=1 // pred_fallthru
      _
    // Predicated region
    $region10: #{decoder_forward.1} parent=1 // pred_check
      _
    $region11: #{decoder_forward.1} parent=1 // pred_check_branch
      %32 = sbr.rel (0) target = $region13
    $region12: #{decoder_forward.1} parent=1 // pred_region
      %34 = vsyncadd [#allocation5], 0
      %s36 = sshll.u32 %s2, 4
      %s37 = int_to_ptr.hbm [resolvable:$true] %s36
      %s38 = sshll.u32 [#allocation4], 4
      %s39 = int_to_ptr.vmem [resolvable:$true] %s38
      %41 = dma.hbm_to_vmem [thread:$0]  %s37, 32, %s39, [#allocation5]
    $region13: #{decoder_forward.1} parent=1 // pred_fallthru
      _
    // Predicated region
    $region14: #{decoder_forward.1} parent=1 // pred_check
      _
    $region15: #{decoder_forward.1} parent=1 // pred_check_branch
      %43 = sbr.rel (0) target = $region17
    $region16: #{decoder_forward.1} parent=1 // pred_region
      %45 = vsyncadd [#allocation7], 0
      %s46 = sshll.u32 %s3, 4
      %s47 = int_to_ptr.hbm [resolvable:$true] %s46
      %s48 = sshll.u32 [#allocation6], 4
      %s49 = int_to_ptr.vmem [resolvable:$true] %s48
      %54 = dma.hbm_to_vmem [thread:$0]  %s47, 16384, %s49, [#allocation7], 512, 512, 32
    $region17: #{decoder_forward.1} parent=1 // pred_fallthru
      _
    // Predicated region
    $region18: #{decoder_forward.1} parent=1 // pred_check
      _
    $region19: #{decoder_forward.1} parent=1 // pred_check_branch
      %56 = sbr.rel (0) target = $region21
    $region20: #{decoder_forward.1} parent=1 // pred_region
      %58 = vsyncadd [#allocation7], 0
      %s60 = sshll.u32 %s4, 4
      %s61 = int_to_ptr.hbm [resolvable:$true] %s60
      %s62 = sshll.u32 [#allocation8], 4
      %s63 = int_to_ptr.vmem [resolvable:$true] %s62
      %65 = dma.hbm_to_vmem [thread:$0]  %s61, 64, %s63, [#allocation7]
    $region21: #{decoder_forward.1} parent=1 // pred_fallthru
      _
    // Predicated region
    $region22: #{decoder_forward.1} parent=1 // pred_check
      _
    $region23: #{decoder_forward.1} parent=1 // pred_check_branch
      %67 = sbr.rel (0) target = $region25
    $region24: #{decoder_forward.1} parent=1 // pred_region
      _
    $region25: #{decoder_forward.1} parent=1 // pred_fallthru
      _
    // Predicated region
    $region26: #{decoder_forward.1} parent=1 // pred_check
      _
    $region27: #{decoder_forward.1} parent=1 // pred_check_branch
      %69 = sbr.rel (0) target = $region29
    $region28: #{decoder_forward.1} parent=1 // pred_region
      %71 = vsyncadd [#allocation10], 0
      %s73 = sshll.u32 %s6, 4
      %s74 = int_to_ptr.hbm [resolvable:$true] %s73
      %s75 = sshll.u32 [#allocation9], 4
      %s76 = int_to_ptr.vmem [resolvable:$true] %s75
      %78 = dma.hbm_to_vmem [thread:$0]  %s74, 128, %s76, [#allocation10]
    $region29: #{decoder_forward.1} parent=1 // pred_fallthru
      _
    // Predicated region
    $region30: #{decoder_forward.1} parent=1 // pred_check
      _
    $region31: #{decoder_forward.1} parent=1 // pred_check_branch
      %80 = sbr.rel (0) target = $region33
    $region32: #{decoder_forward.1} parent=1 // pred_region
      _
    $region33: #{decoder_forward.1} parent=1 // pred_fallthru
      _
    // Predicated region
    $region34: #{decoder_forward.1} parent=1 // pred_check
      _
    $region35: #{decoder_forward.1} parent=1 // pred_check_branch
      %82 = sbr.rel (0) target = $region37
    $region36: #{decoder_forward.1} parent=1 // pred_region
      %84 = vsyncadd [#allocation10], 0
      %s86 = sshll.u32 %s8, 4
      %s87 = int_to_ptr.hbm [resolvable:$true] %s86
      %s88 = sshll.u32 [#allocation11], 4
      %s89 = int_to_ptr.vmem [resolvable:$true] %s88
      %91 = dma.hbm_to_vmem [thread:$0]  %s87, 128, %s89, [#allocation10]
    $region37: #{decoder_forward.1} parent=1 // pred_fallthru
      _
    // Predicated region
    $region38: #{decoder_forward.1} parent=1 // pred_check
      _
    $region39: #{decoder_forward.1} parent=1 // pred_check_branch
      %93 = sbr.rel (0) target = $region41
    $region40: #{decoder_forward.1} parent=1 // pred_region
      _
    $region41: #{decoder_forward.1} parent=1 // pred_fallthru
      _
    // Predicated region
    $region42: #{decoder_forward.1} parent=1 // pred_check
      _
    $region43: #{decoder_forward.1} parent=1 // pred_check_branch
      %95 = sbr.rel (0) target = $region45
    $region44: #{decoder_forward.1} parent=1 // pred_region
      _
    $region45: #{decoder_forward.1} parent=1 // pred_fallthru
      _
    // Predicated region
    $region46: #{decoder_forward.1} parent=1 // pred_check
      _
    $region47: #{decoder_forward.1} parent=1 // pred_check_branch
      %97 = sbr.rel (0) target = $region49
    $region48: #{decoder_forward.1} parent=1 // pred_region
      %99 = vsyncadd [#allocation13], 0
      %s100 = sshll.u32 %s11, 4
      %s101 = int_to_ptr.hbm [resolvable:$true] %s100
      %s102 = sshll.u32 [#allocation12], 4
      %s103 = int_to_ptr.vmem [resolvable:$true] %s102
      %108 = dma.hbm_to_vmem [thread:$0]  %s101, 256, %s103, [#allocation13], 128, 128, 8
    $region49: #{decoder_forward.1} parent=1 // pred_fallthru
      _
    // Predicated region
    $region50: #{decoder_forward.1} parent=1 // pred_check
      _
    $region51: #{decoder_forward.1} parent=1 // pred_check_branch
      %110 = sbr.rel (0) target = $region53
    $region52: #{decoder_forward.1} parent=1 // pred_region
      %112 = vsyncadd [#allocation13], 0
      %s113 = sshll.u32 %s12, 4
      %s114 = int_to_ptr.hbm [resolvable:$true] %s113
      %s115 = sshll.u32 [#allocation14], 4
      %s116 = int_to_ptr.vmem [resolvable:$true] %s115
      %121 = dma.hbm_to_vmem [thread:$0]  %s114, 256, %s116, [#allocation13], 128, 128, 8
    $region53: #{decoder_forward.1} parent=1 // pred_fallthru
      _
    // Predicated region
    $region54: #{decoder_forward.1} parent=1 // pred_check
      _
    $region55: #{decoder_forward.1} parent=1 // pred_check_branch
      %123 = sbr.rel (0) target = $region57
    $region56: #{decoder_forward.1} parent=1 // pred_region
      %125 = vsyncadd [#allocation16], 0
      %s126 = sshll.u32 %s13, 4
      %s127 = int_to_ptr.hbm [resolvable:$true] %s126
      %s128 = sshll.u32 [#allocation15], 4
      %s129 = int_to_ptr.vmem [resolvable:$true] %s128
      %134 = dma.hbm_to_vmem [thread:$0]  %s127, 1024, %s129, [#allocation16], 512, 512, 32
    $region57: #{decoder_forward.1} parent=1 // pred_fallthru
      _
    // Predicated region
    $region58: #{decoder_forward.1} parent=1 // pred_check
      _
    $region59: #{decoder_forward.1} parent=1 // pred_check_branch
      %136 = sbr.rel (0) target = $region61
    $region60: #{decoder_forward.1} parent=1 // pred_region
      %138 = vsyncadd [#allocation16], 0
      %s140 = sshll.u32 %s14, 4
      %s141 = int_to_ptr.hbm [resolvable:$true] %s140
      %s142 = sshll.u32 [#allocation17], 4
      %s143 = int_to_ptr.vmem [resolvable:$true] %s142
      %145 = dma.hbm_to_vmem [thread:$0]  %s141, 256, %s143, [#allocation16]
    $region61: #{decoder_forward.1} parent=1 // pred_fallthru
      _
    // Predicated region
    $region62: #{decoder_forward.1} parent=1 // pred_check
      _
    $region63: #{decoder_forward.1} parent=1 // pred_check_branch
      %147 = sbr.rel (0) target = $region65
    $region64: #{decoder_forward.1} parent=1 // pred_region
      %149 = vsyncadd [#allocation19], 0
      %s150 = sshll.u32 %s15, 4
      %s151 = int_to_ptr.hbm [resolvable:$true] %s150
      %s152 = sshll.u32 [#allocation18], 4
      %s153 = int_to_ptr.vmem [resolvable:$true] %s152
      %158 = dma.hbm_to_vmem [thread:$0]  %s151, 8192, %s153, [#allocation19], 512, 512, 32
    $region65: #{decoder_forward.1} parent=1 // pred_fallthru
      _
    // Predicated region
    $region66: #{decoder_forward.1} parent=1 // pred_check
      _
    $region67: #{decoder_forward.1} parent=1 // pred_check_branch
      %160 = sbr.rel (0) target = $region69
    $region68: #{decoder_forward.1} parent=1 // pred_region
      %162 = dma.done [#allocation5], 32
    $region69: #{decoder_forward.1} parent=1 // pred_fallthru
      _
    // Predicated region
    $region70: #{decoder_forward.1} parent=1 // pred_check
      _
    $region71: #{decoder_forward.1} parent=1 // pred_check_branch
      %164 = sbr.rel (0) target = $region73
    $region72: #{decoder_forward.1} parent=1 // pred_region
      %166 = dma.done [#allocation7], 16384
    $region73: #{decoder_forward.1} parent=1 // pred_fallthru
      _
    // Predicated region
    $region74: #{decoder_forward.1} parent=1 // pred_check
      _
    $region75: #{decoder_forward.1} parent=1 // pred_check_branch
      %168 = sbr.rel (0) target = $region77
    $region76: #{decoder_forward.1} parent=1 // pred_region
      %170 = dma.done [#allocation7], 64
    $region77: #{decoder_forward.1} parent=1 // pred_fallthru
      _
    // Predicated region
    $region78: #{decoder_forward.1} parent=1 // pred_check
      _
    $region79: #{decoder_forward.1} parent=1 // pred_check_branch
      %172 = sbr.rel (0) target = $region81
    $region80: #{decoder_forward.1} parent=1 // pred_region
      %174 = dma.done [#allocation10], 128
    $region81: #{decoder_forward.1} parent=1 // pred_fallthru
      _
    // Predicated region
    $region82: #{decoder_forward.1} parent=1 // pred_check
      _
    $region83: #{decoder_forward.1} parent=1 // pred_check_branch
      %176 = sbr.rel (0) target = $region85
    $region84: #{decoder_forward.1} parent=1 // pred_region
      %178 = dma.done [#allocation10], 128
    $region85: #{decoder_forward.1} parent=1 // pred_fallthru
      _
    // Predicated region
    $region86: #{decoder_forward.1} parent=1 // pred_check
      _
    $region87: #{decoder_forward.1} parent=1 // pred_check_branch
      %180 = sbr.rel (0) target = $region89
    $region88: #{decoder_forward.1} parent=1 // pred_region
      %182 = dma.done [#allocation13], 256
    $region89: #{decoder_forward.1} parent=1 // pred_fallthru
      _
    // Predicated region
    $region90: #{decoder_forward.1} parent=1 // pred_check
      _
    $region91: #{decoder_forward.1} parent=1 // pred_check_branch
      %184 = sbr.rel (0) target = $region93
    $region92: #{decoder_forward.1} parent=1 // pred_region
      %186 = dma.done [#allocation13], 256
    $region93: #{decoder_forward.1} parent=1 // pred_fallthru
      _
    // Predicated region
    $region94: #{decoder_forward.1} parent=1 // pred_check
      _
    $region95: #{decoder_forward.1} parent=1 // pred_check_branch
      %188 = sbr.rel (0) target = $region97
    $region96: #{decoder_forward.1} parent=1 // pred_region
      %190 = dma.done [#allocation16], 1024
    $region97: #{decoder_forward.1} parent=1 // pred_fallthru
      _
    // Predicated region
    $region98: #{decoder_forward.1} parent=1 // pred_check
      _
    $region99: #{decoder_forward.1} parent=1 // pred_check_branch
      %192 = sbr.rel (0) target = $region101
    $region100: #{decoder_forward.1} parent=1 // pred_region
      %194 = dma.done [#allocation16], 256
    $region101: #{decoder_forward.1} parent=1 // pred_fallthru
      _
    // Predicated region
    $region102: #{decoder_forward.1} parent=1 // pred_check
      _
    $region103: #{decoder_forward.1} parent=1 // pred_check_branch
      %196 = sbr.rel (0) target = $region105
    $region104: #{decoder_forward.1} parent=1 // pred_region
      %198 = dma.done [#allocation19], 8192
    $region105: #{decoder_forward.1} parent=1 // pred_fallthru
      _
    %v199 = vld [vmem:[%s0] sm:$0x3]
    %v200 = vld [vmem:[%s1] sm:$0xff]
    %v201 = vld [vmem:[%s1 + $0x8] sm:$0xff]
    %v202 = vld [vmem:[%s1 + $0x10] sm:$0xff]
    %v203 = vld [vmem:[%s1 + $0x18] sm:$0xff]
    %v204 = vld [vmem:[%s1 + $0x20] sm:$0xff]
    %v205 = vld [vmem:[%s1 + $0x28] sm:$0xff]
    %v206 = vld [vmem:[%s1 + $0x30] sm:$0xff]
    %v207 = vld [vmem:[%s1 + $0x38] sm:$0xff]
    %v208 = vld [vmem:[#allocation4] sm:$0x3]
    %v210 = vperm.slane %v208, 0
    %v211 = vperm.slane %v208, 1
    %vm214 = vcmask 261120
    %v216 = vsel %vm214, %v199, 0
    %218 = vmatpush.msra.mxu0 0.0
    %219 = vmatpush.msra.mxu0 0.0
    %220 = vmatpush.msra.mxu0 0.0
    %221 = vmatpush.msra.mxu0 0.0
    %222 = vmatpush.msra.mxu0 0.0
    %223 = vmatpush.msra.mxu0 0.0
    %224 = vmatpush.msra.mxu0 0.0
    %225 = vmatpush.msra.mxu0 0.0
    %226 = vmatpush.msra.mxu0 0.0
    %227 = vmatpush.msra.mxu0 0.0
    %228 = vmatpush.msra.mxu0 0.0
    %229 = vmatpush.msra.mxu0 0.0
    %230 = vmatpush.msra.mxu0 %v206
    %231 = vmatpush.msra.mxu0 %v204
    %232 = vmatpush.msra.mxu0 %v202
    %233 = vmatpush.msra.mxu0 %v200
    %234 = vmatmul.f32.gmra.mxu0 %v216
    %v235 = vpop.f32.mrf.mxu0
    %v236 = vadd.f32 %v210, %v235
    %237 = vdwg.mxu0
    %238 = vmatpush.msra.mxu0 0.0
    %239 = vmatpush.msra.mxu0 0.0
    %240 = vmatpush.msra.mxu0 0.0
    %241 = vmatpush.msra.mxu0 0.0
    %242 = vmatpush.msra.mxu0 0.0
    %243 = vmatpush.msra.mxu0 0.0
    %244 = vmatpush.msra.mxu0 0.0
    %245 = vmatpush.msra.mxu0 0.0
    %246 = vmatpush.msra.mxu0 0.0
    %247 = vmatpush.msra.mxu0 0.0
    %248 = vmatpush.msra.mxu0 0.0
    %249 = vmatpush.msra.mxu0 0.0
    %250 = vmatpush.msra.mxu0 %v207
    %251 = vmatpush.msra.mxu0 %v205
    %252 = vmatpush.msra.mxu0 %v203
    %253 = vmatpush.msra.mxu0 %v201
    %254 = vmatmul.f32.gmra.mxu0 %v216
    %v255 = vpop.f32.mrf.mxu0
    %v256 = vadd.f32 %v211, %v255
    %257 = vdwg.mxu0
    %v258 = vmax.f32 %v236, 0.0
    %v259 = vmax.f32 %v256, 0.0
    %v260 = vld [vmem:[#allocation6] sm:$0xff]
    %v261 = vld [vmem:[#allocation6 + $0x8] sm:$0xff]
    %v262 = vld [vmem:[#allocation6 + $0x10] sm:$0xff]
    %v263 = vld [vmem:[#allocation6 + $0x18] sm:$0xff]
    %v264 = vld [vmem:[#allocation6 + $0x20] sm:$0xff]
    %v265 = vld [vmem:[#allocation6 + $0x28] sm:$0xff]
    %v266 = vld [vmem:[#allocation6 + $0x30] sm:$0xff]
    %v267 = vld [vmem:[#allocation6 + $0x38] sm:$0xff]
    %v268 = vld [vmem:[#allocation6 + $0x40] sm:$0xff]
    %v269 = vld [vmem:[#allocation6 + $0x48] sm:$0xff]
    %v270 = vld [vmem:[#allocation6 + $0x50] sm:$0xff]
    %v271 = vld [vmem:[#allocation6 + $0x58] sm:$0xff]
    %v272 = vld [vmem:[#allocation6 + $0x60] sm:$0xff]
    %v273 = vld [vmem:[#allocation6 + $0x68] sm:$0xff]
    %v274 = vld [vmem:[#allocation6 + $0x70] sm:$0xff]
    %v275 = vld [vmem:[#allocation6 + $0x78] sm:$0xff]
    %v276 = vld [vmem:[#allocation6 + $0x80] sm:$0xff]
    %v277 = vld [vmem:[#allocation6 + $0x88] sm:$0xff]
    %v278 = vld [vmem:[#allocation6 + $0x90] sm:$0xff]
    %v279 = vld [vmem:[#allocation6 + $0x98] sm:$0xff]
    %v280 = vld [vmem:[#allocation6 + $0xa0] sm:$0xff]
    %v281 = vld [vmem:[#allocation6 + $0xa8] sm:$0xff]
    %v282 = vld [vmem:[#allocation6 + $0xb0] sm:$0xff]
    %v283 = vld [vmem:[#allocation6 + $0xb8] sm:$0xff]
    %v284 = vld [vmem:[#allocation6 + $0xc0] sm:$0xff]
    %v285 = vld [vmem:[#allocation6 + $0xc8] sm:$0xff]
    %v286 = vld [vmem:[#allocation6 + $0xd0] sm:$0xff]
    %v287 = vld [vmem:[#allocation6 + $0xd8] sm:$0xff]
    %v288 = vld [vmem:[#allocation6 + $0xe0] sm:$0xff]
    %v289 = vld [vmem:[#allocation6 + $0xe8] sm:$0xff]
    %v290 = vld [vmem:[#allocation6 + $0xf0] sm:$0xff]
    %v291 = vld [vmem:[#allocation6 + $0xf8] sm:$0xff]
    %v292 = vld [vmem:[#allocation6 + $0x100] sm:$0xff]
    %v293 = vld [vmem:[#allocation6 + $0x108] sm:$0xff]
    %v294 = vld [vmem:[#allocation6 + $0x110] sm:$0xff]
    %v295 = vld [vmem:[#allocation6 + $0x118] sm:$0xff]
    %v296 = vld [vmem:[#allocation6 + $0x120] sm:$0xff]
    %v297 = vld [vmem:[#allocation6 + $0x128] sm:$0xff]
    %v298 = vld [vmem:[#allocation6 + $0x130] sm:$0xff]
    %v299 = vld [vmem:[#allocation6 + $0x138] sm:$0xff]
    %v300 = vld [vmem:[#allocation6 + $0x140] sm:$0xff]
    %v301 = vld [vmem:[#allocation6 + $0x148] sm:$0xff]
    %v302 = vld [vmem:[#allocation6 + $0x150] sm:$0xff]
    %v303 = vld [vmem:[#allocation6 + $0x158] sm:$0xff]
    %v304 = vld [vmem:[#allocation6 + $0x160] sm:$0xff]
    %v305 = vld [vmem:[#allocation6 + $0x168] sm:$0xff]
    %v306 = vld [vmem:[#allocation6 + $0x170] sm:$0xff]
    %v307 = vld [vmem:[#allocation6 + $0x178] sm:$0xff]
    %v308 = vld [vmem:[#allocation6 + $0x180] sm:$0xff]
    %v309 = vld [vmem:[#allocation6 + $0x188] sm:$0xff]
    %v310 = vld [vmem:[#allocation6 + $0x190] sm:$0xff]
    %v311 = vld [vmem:[#allocation6 + $0x198] sm:$0xff]
    %v312 = vld [vmem:[#allocation6 + $0x1a0] sm:$0xff]
    %v313 = vld [vmem:[#allocation6 + $0x1a8] sm:$0xff]
    %v314 = vld [vmem:[#allocation6 + $0x1b0] sm:$0xff]
    %v315 = vld [vmem:[#allocation6 + $0x1b8] sm:$0xff]
    %v316 = vld [vmem:[#allocation6 + $0x1c0] sm:$0xff]
    %v317 = vld [vmem:[#allocation6 + $0x1c8] sm:$0xff]
    %v318 = vld [vmem:[#allocation6 + $0x1d0] sm:$0xff]
    %v319 = vld [vmem:[#allocation6 + $0x1d8] sm:$0xff]
    %v320 = vld [vmem:[#allocation6 + $0x1e0] sm:$0xff]
    %v321 = vld [vmem:[#allocation6 + $0x1e8] sm:$0xff]
    %v322 = vld [vmem:[#allocation6 + $0x1f0] sm:$0xff]
    %v323 = vld [vmem:[#allocation6 + $0x1f8] sm:$0xff]
    %v324 = vld [vmem:[#allocation6 + $0x200] sm:$0xff]
    %v325 = vld [vmem:[#allocation6 + $0x208] sm:$0xff]
    %v326 = vld [vmem:[#allocation6 + $0x210] sm:$0xff]
    %v327 = vld [vmem:[#allocation6 + $0x218] sm:$0xff]
    %v328 = vld [vmem:[#allocation6 + $0x220] sm:$0xff]
    %v329 = vld [vmem:[#allocation6 + $0x228] sm:$0xff]
    %v330 = vld [vmem:[#allocation6 + $0x230] sm:$0xff]
    %v331 = vld [vmem:[#allocation6 + $0x238] sm:$0xff]
    %v332 = vld [vmem:[#allocation6 + $0x240] sm:$0xff]
    %v333 = vld [vmem:[#allocation6 + $0x248] sm:$0xff]
    %v334 = vld [vmem:[#allocation6 + $0x250] sm:$0xff]
    %v335 = vld [vmem:[#allocation6 + $0x258] sm:$0xff]
    %v336 = vld [vmem:[#allocation6 + $0x260] sm:$0xff]
    %v337 = vld [vmem:[#allocation6 + $0x268] sm:$0xff]
    %v338 = vld [vmem:[#allocation6 + $0x270] sm:$0xff]
    %v339 = vld [vmem:[#allocation6 + $0x278] sm:$0xff]
    %v340 = vld [vmem:[#allocation6 + $0x280] sm:$0xff]
    %v341 = vld [vmem:[#allocation6 + $0x288] sm:$0xff]
    %v342 = vld [vmem:[#allocation6 + $0x290] sm:$0xff]
    %v343 = vld [vmem:[#allocation6 + $0x298] sm:$0xff]
    %v344 = vld [vmem:[#allocation6 + $0x2a0] sm:$0xff]
    %v345 = vld [vmem:[#allocation6 + $0x2a8] sm:$0xff]
    %v346 = vld [vmem:[#allocation6 + $0x2b0] sm:$0xff]
    %v347 = vld [vmem:[#allocation6 + $0x2b8] sm:$0xff]
    %v348 = vld [vmem:[#allocation6 + $0x2c0] sm:$0xff]
    %v349 = vld [vmem:[#allocation6 + $0x2c8] sm:$0xff]
    %v350 = vld [vmem:[#allocation6 + $0x2d0] sm:$0xff]
    %v351 = vld [vmem:[#allocation6 + $0x2d8] sm:$0xff]
    %v352 = vld [vmem:[#allocation6 + $0x2e0] sm:$0xff]
    %v353 = vld [vmem:[#allocation6 + $0x2e8] sm:$0xff]
    %v354 = vld [vmem:[#allocation6 + $0x2f0] sm:$0xff]
    %v355 = vld [vmem:[#allocation6 + $0x2f8] sm:$0xff]
    %v356 = vld [vmem:[#allocation6 + $0x300] sm:$0xff]
    %v357 = vld [vmem:[#allocation6 + $0x308] sm:$0xff]
    %v358 = vld [vmem:[#allocation6 + $0x310] sm:$0xff]
    %v359 = vld [vmem:[#allocation6 + $0x318] sm:$0xff]
    %v360 = vld [vmem:[#allocation6 + $0x320] sm:$0xff]
    %v361 = vld [vmem:[#allocation6 + $0x328] sm:$0xff]
    %v362 = vld [vmem:[#allocation6 + $0x330] sm:$0xff]
    %v363 = vld [vmem:[#allocation6 + $0x338] sm:$0xff]
    %v364 = vld [vmem:[#allocation6 + $0x340] sm:$0xff]
    %v365 = vld [vmem:[#allocation6 + $0x348] sm:$0xff]
    %v366 = vld [vmem:[#allocation6 + $0x350] sm:$0xff]
    %v367 = vld [vmem:[#allocation6 + $0x358] sm:$0xff]
    %v368 = vld [vmem:[#allocation6 + $0x360] sm:$0xff]
    %v369 = vld [vmem:[#allocation6 + $0x368] sm:$0xff]
    %v370 = vld [vmem:[#allocation6 + $0x370] sm:$0xff]
    %v371 = vld [vmem:[#allocation6 + $0x378] sm:$0xff]
    %v372 = vld [vmem:[#allocation6 + $0x380] sm:$0xff]
    %v373 = vld [vmem:[#allocation6 + $0x388] sm:$0xff]
    %v374 = vld [vmem:[#allocation6 + $0x390] sm:$0xff]
    %v375 = vld [vmem:[#allocation6 + $0x398] sm:$0xff]
    %v376 = vld [vmem:[#allocation6 + $0x3a0] sm:$0xff]
    %v377 = vld [vmem:[#allocation6 + $0x3a8] sm:$0xff]
    %v378 = vld [vmem:[#allocation6 + $0x3b0] sm:$0xff]
    %v379 = vld [vmem:[#allocation6 + $0x3b8] sm:$0xff]
    %v380 = vld [vmem:[#allocation6 + $0x3c0] sm:$0xff]
    %v381 = vld [vmem:[#allocation6 + $0x3c8] sm:$0xff]
    %v382 = vld [vmem:[#allocation6 + $0x3d0] sm:$0xff]
    %v383 = vld [vmem:[#allocation6 + $0x3d8] sm:$0xff]
    %v384 = vld [vmem:[#allocation6 + $0x3e0] sm:$0xff]
    %v385 = vld [vmem:[#allocation6 + $0x3e8] sm:$0xff]
    %v386 = vld [vmem:[#allocation6 + $0x3f0] sm:$0xff]
    %v387 = vld [vmem:[#allocation6 + $0x3f8] sm:$0xff]
    %v388 = vld [vmem:[#allocation8] sm:$0xf]
    %v390 = vperm.slane %v388, 0
    %v391 = vperm.slane %v388, 1
    %v392 = vperm.slane %v388, 2
    %v393 = vperm.slane %v388, 3
    %398 = vmatpush.msra.mxu0 %v320
    %399 = vmatpush.msra.mxu0 %v316
    %400 = vmatpush.msra.mxu0 %v312
    %401 = vmatpush.msra.mxu0 %v308
    %402 = vmatpush.msra.mxu0 %v304
    %403 = vmatpush.msra.mxu0 %v300
    %404 = vmatpush.msra.mxu0 %v296
    %405 = vmatpush.msra.mxu0 %v292
    %406 = vmatpush.msra.mxu0 %v288
    %407 = vmatpush.msra.mxu0 %v284
    %408 = vmatpush.msra.mxu0 %v280
    %409 = vmatpush.msra.mxu0 %v276
    %410 = vmatpush.msra.mxu0 %v272
    %411 = vmatpush.msra.mxu0 %v268
    %412 = vmatpush.msra.mxu0 %v264
    %413 = vmatpush.msra.mxu0 %v260
    %414 = vmatmul.f32.gmra.mxu0 %v258
    %v415 = vpop.f32.mrf.mxu0
    %v416 = vadd.f32 %v390, %v415
    %417 = vdwg.mxu0
    %418 = vmatpush.msra.mxu0 %v384
    %419 = vmatpush.msra.mxu0 %v380
    %420 = vmatpush.msra.mxu0 %v376
    %421 = vmatpush.msra.mxu0 %v372
    %422 = vmatpush.msra.mxu0 %v368
    %423 = vmatpush.msra.mxu0 %v364
    %424 = vmatpush.msra.mxu0 %v360
    %425 = vmatpush.msra.mxu0 %v356
    %426 = vmatpush.msra.mxu0 %v352
    %427 = vmatpush.msra.mxu0 %v348
    %428 = vmatpush.msra.mxu0 %v344
    %429 = vmatpush.msra.mxu0 %v340
    %430 = vmatpush.msra.mxu0 %v336
    %431 = vmatpush.msra.mxu0 %v332
    %432 = vmatpush.msra.mxu0 %v328
    %433 = vmatpush.msra.mxu0 %v324
    %434 = vmatmul.f32.gmra.mxu0 %v259
    %v435 = vpop.f32.mrf.mxu0
    %v436 = vadd.f32 %v416, %v435
    %437 = vdwg.mxu0
    %438 = vmatpush.msra.mxu0 %v321
    %439 = vmatpush.msra.mxu0 %v317
    %440 = vmatpush.msra.mxu0 %v313
    %441 = vmatpush.msra.mxu0 %v309
    %442 = vmatpush.msra.mxu0 %v305
    %443 = vmatpush.msra.mxu0 %v301
    %444 = vmatpush.msra.mxu0 %v297
    %445 = vmatpush.msra.mxu0 %v293
    %446 = vmatpush.msra.mxu0 %v289
    %447 = vmatpush.msra.mxu0 %v285
    %448 = vmatpush.msra.mxu0 %v281
    %449 = vmatpush.msra.mxu0 %v277
    %450 = vmatpush.msra.mxu0 %v273
    %451 = vmatpush.msra.mxu0 %v269
    %452 = vmatpush.msra.mxu0 %v265
    %453 = vmatpush.msra.mxu0 %v261
    %454 = vmatmul.f32.gmra.mxu0 %v258
    %v455 = vpop.f32.mrf.mxu0
    %v456 = vadd.f32 %v391, %v455
    %457 = vdwg.mxu0
    %458 = vmatpush.msra.mxu0 %v385
    %459 = vmatpush.msra.mxu0 %v381
    %460 = vmatpush.msra.mxu0 %v377
    %461 = vmatpush.msra.mxu0 %v373
    %462 = vmatpush.msra.mxu0 %v369
    %463 = vmatpush.msra.mxu0 %v365
    %464 = vmatpush.msra.mxu0 %v361
    %465 = vmatpush.msra.mxu0 %v357
    %466 = vmatpush.msra.mxu0 %v353
    %467 = vmatpush.msra.mxu0 %v349
    %468 = vmatpush.msra.mxu0 %v345
    %469 = vmatpush.msra.mxu0 %v341
    %470 = vmatpush.msra.mxu0 %v337
    %471 = vmatpush.msra.mxu0 %v333
    %472 = vmatpush.msra.mxu0 %v329
    %473 = vmatpush.msra.mxu0 %v325
    %474 = vmatmul.f32.gmra.mxu0 %v259
    %v475 = vpop.f32.mrf.mxu0
    %v476 = vadd.f32 %v456, %v475
    %477 = vdwg.mxu0
    %478 = vmatpush.msra.mxu0 %v322
    %479 = vmatpush.msra.mxu0 %v318
    %480 = vmatpush.msra.mxu0 %v314
    %481 = vmatpush.msra.mxu0 %v310
    %482 = vmatpush.msra.mxu0 %v306
    %483 = vmatpush.msra.mxu0 %v302
    %484 = vmatpush.msra.mxu0 %v298
    %485 = vmatpush.msra.mxu0 %v294
    %486 = vmatpush.msra.mxu0 %v290
    %487 = vmatpush.msra.mxu0 %v286
    %488 = vmatpush.msra.mxu0 %v282
    %489 = vmatpush.msra.mxu0 %v278
    %490 = vmatpush.msra.mxu0 %v274
    %491 = vmatpush.msra.mxu0 %v270
    %492 = vmatpush.msra.mxu0 %v266
    %493 = vmatpush.msra.mxu0 %v262
    %494 = vmatmul.f32.gmra.mxu0 %v258
    %v495 = vpop.f32.mrf.mxu0
    %v496 = vadd.f32 %v392, %v495
    %497 = vdwg.mxu0
    %498 = vmatpush.msra.mxu0 %v386
    %499 = vmatpush.msra.mxu0 %v382
    %500 = vmatpush.msra.mxu0 %v378
    %501 = vmatpush.msra.mxu0 %v374
    %502 = vmatpush.msra.mxu0 %v370
    %503 = vmatpush.msra.mxu0 %v366
    %504 = vmatpush.msra.mxu0 %v362
    %505 = vmatpush.msra.mxu0 %v358
    %506 = vmatpush.msra.mxu0 %v354
    %507 = vmatpush.msra.mxu0 %v350
    %508 = vmatpush.msra.mxu0 %v346
    %509 = vmatpush.msra.mxu0 %v342
    %510 = vmatpush.msra.mxu0 %v338
    %511 = vmatpush.msra.mxu0 %v334
    %512 = vmatpush.msra.mxu0 %v330
    %513 = vmatpush.msra.mxu0 %v326
    %514 = vmatmul.f32.gmra.mxu0 %v259
    %v515 = vpop.f32.mrf.mxu0
    %v516 = vadd.f32 %v496, %v515
    %517 = vdwg.mxu0
    %518 = vmatpush.msra.mxu0 %v323
    %519 = vmatpush.msra.mxu0 %v319
    %520 = vmatpush.msra.mxu0 %v315
    %521 = vmatpush.msra.mxu0 %v311
    %522 = vmatpush.msra.mxu0 %v307
    %523 = vmatpush.msra.mxu0 %v303
    %524 = vmatpush.msra.mxu0 %v299
    %525 = vmatpush.msra.mxu0 %v295
    %526 = vmatpush.msra.mxu0 %v291
    %527 = vmatpush.msra.mxu0 %v287
    %528 = vmatpush.msra.mxu0 %v283
    %529 = vmatpush.msra.mxu0 %v279
    %530 = vmatpush.msra.mxu0 %v275
    %531 = vmatpush.msra.mxu0 %v271
    %532 = vmatpush.msra.mxu0 %v267
    %533 = vmatpush.msra.mxu0 %v263
    %534 = vmatmul.f32.gmra.mxu0 %v258
    %v535 = vpop.f32.mrf.mxu0
    %v536 = vadd.f32 %v393, %v535
    %537 = vdwg.mxu0
    %538 = vmatpush.msra.mxu0 %v387
    %539 = vmatpush.msra.mxu0 %v383
    %540 = vmatpush.msra.mxu0 %v379
    %541 = vmatpush.msra.mxu0 %v375
    %542 = vmatpush.msra.mxu0 %v371
    %543 = vmatpush.msra.mxu0 %v367
    %544 = vmatpush.msra.mxu0 %v363
    %545 = vmatpush.msra.mxu0 %v359
    %546 = vmatpush.msra.mxu0 %v355
    %547 = vmatpush.msra.mxu0 %v351
    %548 = vmatpush.msra.mxu0 %v347
    %549 = vmatpush.msra.mxu0 %v343
    %550 = vmatpush.msra.mxu0 %v339
    %551 = vmatpush.msra.mxu0 %v335
    %552 = vmatpush.msra.mxu0 %v331
    %553 = vmatpush.msra.mxu0 %v327
    %554 = vmatmul.f32.gmra.mxu0 %v259
    %v555 = vpop.f32.mrf.mxu0
    %v556 = vadd.f32 %v536, %v555
    %557 = vdwg.mxu0
    %v558 = vmax.f32 %v436, 0.0
    %v559 = vmax.f32 %v476, 0.0
    %v560 = vmax.f32 %v516, 0.0
    %v561 = vmax.f32 %v556, 0.0
    %562 = vst [vmem:[#allocation2] sm:$0x3] %v558
    %563 = vst [vmem:[#allocation2 + $0x2] sm:$0x3] %v559
    %564 = vst [vmem:[#allocation2 + $0x4] sm:$0x3] %v560
    %565 = vst [vmem:[#allocation2 + $0x6] sm:$0x3] %v561
    %v566 = vld [vmem:[#allocation2] sm:$0xff]
    %v567 = vld [vmem:[#allocation14] sm:$0xff]
    %v568 = vld [vmem:[#allocation14 + $0x8] sm:$0x1]
    %v569 = vld [vmem:[#allocation15] sm:$0xff]
    %v570 = vld [vmem:[#allocation15 + $0x8] sm:$0xff]
    %v571 = vld [vmem:[#allocation15 + $0x10] sm:$0xff]
    %v572 = vld [vmem:[#allocation15 + $0x18] sm:$0xff]
    %v573 = vld [vmem:[#allocation15 + $0x20] sm:$0x1]
    %v574 = vld [vmem:[#allocation15 + $0x28] sm:$0x1]
    %v575 = vld [vmem:[#allocation15 + $0x30] sm:$0x1]
    %v576 = vld [vmem:[#allocation15 + $0x38] sm:$0x1]
    %v577 = vld [vmem:[#allocation12] sm:$0xff]
    %s578 = scalar_lea.vmem [#allocation12], 8
    %v579 = vld [vmem:[%s578] sm:$0xff]
    %580 = vrot.lane.b32.xlu0 %v566, 102
    %v581 = vpop.permute.xlu0 %580
    %v582 = vperm.slane %v567, 0
    %v583 = vmul.f32 %v581, %v582
    %584 = vst [vmem:[#allocation3] sm:$0xff] %v583
    %585 = vrot.lane.b32.xlu0 %v566, 103
    %v586 = vpop.permute.xlu0 %585
    %v587 = vperm.slane %v567, 1
    %v588 = vmul.f32 %v586, %v587
    %589 = vst [vmem:[#allocation3 + $0x20] sm:$0xff] %v588
    %590 = vrot.lane.b32.xlu0 %v566, 104
    %v591 = vpop.permute.xlu0 %590
    %v592 = vperm.slane %v567, 2
    %v593 = vmul.f32 %v591, %v592
    %594 = vst [vmem:[#allocation3 + $0x40] sm:$0xff] %v593
    %595 = vrot.lane.b32.xlu0 %v566, 127
    %v596 = vpop.permute.xlu0 %595
    %v597 = vperm.slane %v567, 3
    %v598 = vmul.f32 %v596, %v597
    %599 = vst [vmem:[#allocation3 + $0x60] sm:$0xff] %v598
    %v600 = vperm.slane %v567, 4
    %v601 = vmul.f32 %v566, %v600
    %602 = vst [vmem:[#allocation3 + $0x80] sm:$0xff] %v601
    %603 = vrot.lane.b32.xlu0 %v566, 1
    %v604 = vpop.permute.xlu0 %603
    %v605 = vperm.slane %v567, 5
    %v606 = vmul.f32 %v604, %v605
    %607 = vst [vmem:[#allocation3 + $0xa0] sm:$0xff] %v606
    %608 = vrot.lane.b32.xlu0 %v566, 24
    %v609 = vpop.permute.xlu0 %608
    %v610 = vperm.slane %v567, 6
    %v611 = vmul.f32 %v609, %v610
    %612 = vst [vmem:[#allocation3 + $0xc0] sm:$0xff] %v611
    %613 = vrot.lane.b32.xlu0 %v566, 25
    %v614 = vpop.permute.xlu0 %613
    %v615 = vperm.slane %v567, 7
    %v616 = vmul.f32 %v614, %v615
    %617 = vst [vmem:[#allocation3 + $0xe0] sm:$0xff] %v616
    %618 = vrot.lane.b32.xlu0 %v566, 26
    %v619 = vpop.permute.xlu0 %618
    %v620 = vperm.slane %v568, 0
    %v621 = vmul.f32 %v619, %v620
    %622 = vst [vmem:[#allocation3 + $0x100] sm:$0xff] %v621
    %v623 = vld [vmem:[#allocation3] sm:$0xff]
    %v624 = vld [vmem:[#allocation3 + $0x20] sm:$0xff]
    %v625 = vld [vmem:[#allocation3 + $0x40] sm:$0xff]
    %v626 = vld [vmem:[#allocation3 + $0x60] sm:$0xff]
    %v627 = vld [vmem:[#allocation3 + $0x80] sm:$0xff]
    %v628 = vld [vmem:[#allocation3 + $0xa0] sm:$0xff]
    %v629 = vld [vmem:[#allocation3 + $0xc0] sm:$0xff]
    %v630 = vld [vmem:[#allocation3 + $0xe0] sm:$0xff]
    %v631 = vld [vmem:[#allocation3 + $0x100] sm:$0xff]
    %v632 = vld [vmem:[%s5] sm:$0xff]
    %vm633 = vcmask 588800
    %v635 = vsel %vm633, %v632, 0
    %637 = vmatpush.msra.mxu0 0.0
    %638 = vmatpush.msra.mxu0 0.0
    %639 = vmatpush.msra.mxu0 0.0
    %640 = vmatpush.msra.mxu0 0.0
    %641 = vmatpush.msra.mxu0 0.0
    %642 = vmatpush.msra.mxu0 0.0
    %643 = vmatpush.msra.mxu0 0.0
    %644 = vmatpush.msra.mxu0 %v631
    %645 = vmatpush.msra.mxu0 %v630
    %646 = vmatpush.msra.mxu0 %v629
    %647 = vmatpush.msra.mxu0 %v628
    %648 = vmatpush.msra.mxu0 %v627
    %649 = vmatpush.msra.mxu0 %v626
    %650 = vmatpush.msra.mxu0 %v625
    %651 = vmatpush.msra.mxu0 %v624
    %652 = vmatpush.msra.mxu0 %v623
    %653 = vmatmul.f32.gmra.mxu0 %v635
    %v654 = vpop.f32.mrf.mxu0
    %v655 = vadd.f32 0.0, %v654
    %656 = vdwg.mxu0
    %v657 = vld [vmem:[%s9] sm:$0xff]
    %v658 = vld [vmem:[%s10] sm:$0xff]
    %vm659 = vcmask 64512
    %v661 = vsel %vm659, %v577, 0
    %663 = vmatpush.msra.mxu0 0.0
    %664 = vmatpush.msra.mxu0 0.0
    %665 = vmatpush.msra.mxu0 0.0
    %666 = vmatpush.msra.mxu0 0.0
    %667 = vmatpush.msra.mxu0 0.0
    %668 = vmatpush.msra.mxu0 0.0
    %669 = vmatpush.msra.mxu0 0.0
    %670 = vmatpush.msra.mxu0 0.0
    %671 = vmatpush.msra.mxu0 0.0
    %672 = vmatpush.msra.mxu0 0.0
    %673 = vmatpush.msra.mxu0 0.0
    %674 = vmatpush.msra.mxu0 0.0
    %675 = vmatpush.msra.mxu0 0.0
    %676 = vmatpush.msra.mxu0 0.0
    %677 = vmatpush.msra.mxu0 0.0
    %678 = vmatpush.msra.mxu0 %v655
    %679 = vmatmul.f32.gmra.mxu0 %v661
    %v680 = vpop.f32.mrf.mxu0
    %v681 = vadd.f32 0.0, %v680
    %682 = vdwg.mxu0
    %683 = vadd.xlane.f32.xlu0 %v681
    %v684 = vpop.xlane.xlu0 %683
    %v685 = vmul.f32 %v655, %v655
    %686 = vmatpush.msra.mxu0 0.0
    %687 = vmatpush.msra.mxu0 0.0
    %688 = vmatpush.msra.mxu0 0.0
    %689 = vmatpush.msra.mxu0 0.0
    %690 = vmatpush.msra.mxu0 0.0
    %691 = vmatpush.msra.mxu0 0.0
    %692 = vmatpush.msra.mxu0 0.0
    %693 = vmatpush.msra.mxu0 0.0
    %694 = vmatpush.msra.mxu0 0.0
    %695 = vmatpush.msra.mxu0 0.0
    %696 = vmatpush.msra.mxu0 0.0
    %697 = vmatpush.msra.mxu0 0.0
    %698 = vmatpush.msra.mxu0 0.0
    %699 = vmatpush.msra.mxu0 0.0
    %700 = vmatpush.msra.mxu0 0.0
    %701 = vmatpush.msra.mxu0 %v685
    %702 = vmatmul.f32.gmra.mxu0 %v661
    %v703 = vpop.f32.mrf.mxu0
    %v704 = vadd.f32 0.0, %v703
    %705 = vdwg.mxu0
    %706 = vadd.xlane.f32.xlu0 %v704
    %v707 = vpop.xlane.xlu0 %706
    %v708 = vmul.f32 %v684, %v684
    %v709 = vsub.f32 %v707, %v708
    %v710 = vadd.f32 %v709, 1e-05
    %v711 = vrsqrt.pop %v710
    %v712 = vmul.f32 %v711, %v710
    %v713 = vmul.f32 %v712, %v711
    %v714 = vmul.f32 0.5, %v713
    %v715 = vsub.f32 1.5, %v714
    %v716 = vmul.f32 %v711, %v715
    %vm717 = vweird.f32 %v710
    %vm718 = vweird.f32 %v711
    %vm719 = vmor %vm717, %vm718
    %v720 = vsel %vm719, %v711, %v716
    %v721 = vmul.f32 %v720, %v657
    %v722 = vsub.f32 %v655, %v684
    %724 = vset.pattern.permute.xlu0 0
    %725 = vperm.xlu0 %724, %v721
    %v726 = vpop.permute.xlu0 %725
    %v728 = vmul.f32 %v722, %v726
    %730 = vset.pattern.permute.xlu0 0
    %731 = vperm.xlu0 %730, %v658
    %v732 = vpop.permute.xlu0 %731
    %v734 = vadd.f32 %v728, %v732
    %v735 = vmax.f32 %v734, 0.0
    %736 = vrot.lane.b32.xlu0 %v735, 102
    %v737 = vpop.permute.xlu0 %736
    %v738 = vmul.f32 %v737, %v582
    %739 = vst [vmem:[#allocation3] sm:$0xff] %v738
    %740 = vrot.lane.b32.xlu0 %v735, 103
    %v741 = vpop.permute.xlu0 %740
    %v742 = vmul.f32 %v741, %v587
    %743 = vst [vmem:[#allocation3 + $0x20] sm:$0xff] %v742
    %744 = vrot.lane.b32.xlu0 %v735, 104
    %v745 = vpop.permute.xlu0 %744
    %v746 = vmul.f32 %v745, %v592
    %747 = vst [vmem:[#allocation3 + $0x40] sm:$0xff] %v746
    %748 = vrot.lane.b32.xlu0 %v735, 127
    %v749 = vpop.permute.xlu0 %748
    %v750 = vmul.f32 %v749, %v597
    %751 = vst [vmem:[#allocation3 + $0x60] sm:$0xff] %v750
    %v752 = vmul.f32 %v735, %v600
    %753 = vst [vmem:[#allocation3 + $0x80] sm:$0xff] %v752
    %754 = vrot.lane.b32.xlu0 %v735, 1
    %v755 = vpop.permute.xlu0 %754
    %v756 = vmul.f32 %v755, %v605
    %757 = vst [vmem:[#allocation3 + $0xa0] sm:$0xff] %v756
    %758 = vrot.lane.b32.xlu0 %v735, 24
    %v759 = vpop.permute.xlu0 %758
    %v760 = vmul.f32 %v759, %v610
    %761 = vst [vmem:[#allocation3 + $0xc0] sm:$0xff] %v760
    %762 = vrot.lane.b32.xlu0 %v735, 25
    %v763 = vpop.permute.xlu0 %762
    %v764 = vmul.f32 %v763, %v615
    %765 = vst [vmem:[#allocation3 + $0xe0] sm:$0xff] %v764
    %766 = vrot.lane.b32.xlu0 %v735, 26
    %v767 = vpop.permute.xlu0 %766
    %v768 = vmul.f32 %v767, %v620
    %769 = vst [vmem:[#allocation3 + $0x100] sm:$0xff] %v768
    %v770 = vld [vmem:[#allocation3] sm:$0xff]
    %v771 = vld [vmem:[#allocation3 + $0x20] sm:$0xff]
    %v772 = vld [vmem:[#allocation3 + $0x40] sm:$0xff]
    %v773 = vld [vmem:[#allocation3 + $0x60] sm:$0xff]
    %v774 = vld [vmem:[#allocation3 + $0x80] sm:$0xff]
    %v775 = vld [vmem:[#allocation3 + $0xa0] sm:$0xff]
    %v776 = vld [vmem:[#allocation3 + $0xc0] sm:$0xff]
    %v777 = vld [vmem:[#allocation3 + $0xe0] sm:$0xff]
    %v778 = vld [vmem:[#allocation3 + $0x100] sm:$0xff]
    %v779 = vld [vmem:[#allocation9] sm:$0xff]
    %v781 = vsel %vm633, %v779, 0
    %783 = vmatpush.msra.mxu0 0.0
    %784 = vmatpush.msra.mxu0 0.0
    %785 = vmatpush.msra.mxu0 0.0
    %786 = vmatpush.msra.mxu0 0.0
    %787 = vmatpush.msra.mxu0 0.0
    %788 = vmatpush.msra.mxu0 0.0
    %789 = vmatpush.msra.mxu0 0.0
    %790 = vmatpush.msra.mxu0 %v778
    %791 = vmatpush.msra.mxu0 %v777
    %792 = vmatpush.msra.mxu0 %v776
    %793 = vmatpush.msra.mxu0 %v775
    %794 = vmatpush.msra.mxu0 %v774
    %795 = vmatpush.msra.mxu0 %v773
    %796 = vmatpush.msra.mxu0 %v772
    %797 = vmatpush.msra.mxu0 %v771
    %798 = vmatpush.msra.mxu0 %v770
    %799 = vmatmul.f32.gmra.mxu0 %v781
    %v800 = vpop.f32.mrf.mxu0
    %v801 = vadd.f32 0.0, %v800
    %802 = vdwg.mxu0
    %s803 = scalar_lea.vmem %s9, 8
    %v804 = vld [vmem:[%s803] sm:$0xff]
    %s805 = scalar_lea.vmem %s10, 8
    %v806 = vld [vmem:[%s805] sm:$0xff]
    %807 = vmatpush.msra.mxu0 0.0
    %808 = vmatpush.msra.mxu0 0.0
    %809 = vmatpush.msra.mxu0 0.0
    %810 = vmatpush.msra.mxu0 0.0
    %811 = vmatpush.msra.mxu0 0.0
    %812 = vmatpush.msra.mxu0 0.0
    %813 = vmatpush.msra.mxu0 0.0
    %814 = vmatpush.msra.mxu0 0.0
    %815 = vmatpush.msra.mxu0 0.0
    %816 = vmatpush.msra.mxu0 0.0
    %817 = vmatpush.msra.mxu0 0.0
    %818 = vmatpush.msra.mxu0 0.0
    %819 = vmatpush.msra.mxu0 0.0
    %820 = vmatpush.msra.mxu0 0.0
    %821 = vmatpush.msra.mxu0 0.0
    %822 = vmatpush.msra.mxu0 %v801
    %823 = vmatmul.f32.gmra.mxu0 %v661
    %v824 = vpop.f32.mrf.mxu0
    %v825 = vadd.f32 0.0, %v824
    %826 = vdwg.mxu0
    %827 = vadd.xlane.f32.xlu0 %v825
    %v828 = vpop.xlane.xlu0 %827
    %v829 = vmul.f32 %v801, %v801
    %830 = vmatpush.msra.mxu0 0.0
    %831 = vmatpush.msra.mxu0 0.0
    %832 = vmatpush.msra.mxu0 0.0
    %833 = vmatpush.msra.mxu0 0.0
    %834 = vmatpush.msra.mxu0 0.0
    %835 = vmatpush.msra.mxu0 0.0
    %836 = vmatpush.msra.mxu0 0.0
    %837 = vmatpush.msra.mxu0 0.0
    %838 = vmatpush.msra.mxu0 0.0
    %839 = vmatpush.msra.mxu0 0.0
    %840 = vmatpush.msra.mxu0 0.0
    %841 = vmatpush.msra.mxu0 0.0
    %842 = vmatpush.msra.mxu0 0.0
    %843 = vmatpush.msra.mxu0 0.0
    %844 = vmatpush.msra.mxu0 0.0
    %845 = vmatpush.msra.mxu0 %v829
    %846 = vmatmul.f32.gmra.mxu0 %v661
    %v847 = vpop.f32.mrf.mxu0
    %v848 = vadd.f32 0.0, %v847
    %849 = vdwg.mxu0
    %850 = vadd.xlane.f32.xlu0 %v848
    %v851 = vpop.xlane.xlu0 %850
    %v852 = vmul.f32 %v828, %v828
    %v853 = vsub.f32 %v851, %v852
    %v854 = vadd.f32 %v853, 1e-05
    %v855 = vrsqrt.pop %v854
    %v856 = vmul.f32 %v855, %v854
    %v857 = vmul.f32 %v856, %v855
    %v858 = vmul.f32 0.5, %v857
    %v859 = vsub.f32 1.5, %v858
    %v860 = vmul.f32 %v855, %v859
    %vm861 = vweird.f32 %v854
    %vm862 = vweird.f32 %v855
    %vm863 = vmor %vm861, %vm862
    %v864 = vsel %vm863, %v855, %v860
    %v865 = vmul.f32 %v864, %v804
    %v866 = vsub.f32 %v801, %v828
    %868 = vset.pattern.permute.xlu0 0
    %869 = vperm.xlu0 %868, %v865
    %v870 = vpop.permute.xlu0 %869
    %v872 = vmul.f32 %v866, %v870
    %874 = vset.pattern.permute.xlu0 0
    %875 = vperm.xlu0 %874, %v806
    %v876 = vpop.permute.xlu0 %875
    %v878 = vadd.f32 %v872, %v876
    %v879 = vmax.f32 %v878, 0.0
    %v880 = vld [vmem:[#allocation18] sm:$0xff]
    %v881 = vld [vmem:[#allocation18 + $0x8] sm:$0xff]
    %v882 = vld [vmem:[#allocation18 + $0x10] sm:$0xff]
    %v883 = vld [vmem:[#allocation18 + $0x18] sm:$0xff]
    %v884 = vld [vmem:[#allocation18 + $0x20] sm:$0xff]
    %v885 = vld [vmem:[#allocation18 + $0x28] sm:$0xff]
    %v886 = vld [vmem:[#allocation18 + $0x30] sm:$0xff]
    %v887 = vld [vmem:[#allocation18 + $0x38] sm:$0xff]
    %v888 = vld [vmem:[#allocation18 + $0x40] sm:$0xff]
    %v889 = vld [vmem:[#allocation18 + $0x48] sm:$0xff]
    %v890 = vld [vmem:[#allocation18 + $0x50] sm:$0xff]
    %v891 = vld [vmem:[#allocation18 + $0x58] sm:$0xff]
    %v892 = vld [vmem:[#allocation18 + $0x60] sm:$0xff]
    %v893 = vld [vmem:[#allocation18 + $0x68] sm:$0xff]
    %v894 = vld [vmem:[#allocation18 + $0x70] sm:$0xff]
    %v895 = vld [vmem:[#allocation18 + $0x78] sm:$0xff]
    %v896 = vld [vmem:[#allocation18 + $0x80] sm:$0xff]
    %v897 = vld [vmem:[#allocation18 + $0x88] sm:$0xff]
    %v898 = vld [vmem:[#allocation18 + $0x90] sm:$0xff]
    %v899 = vld [vmem:[#allocation18 + $0x98] sm:$0xff]
    %v900 = vld [vmem:[#allocation18 + $0xa0] sm:$0xff]
    %v901 = vld [vmem:[#allocation18 + $0xa8] sm:$0xff]
    %v902 = vld [vmem:[#allocation18 + $0xb0] sm:$0xff]
    %v903 = vld [vmem:[#allocation18 + $0xb8] sm:$0xff]
    %v904 = vld [vmem:[#allocation18 + $0xc0] sm:$0xff]
    %v905 = vld [vmem:[#allocation18 + $0xc8] sm:$0xff]
    %v906 = vld [vmem:[#allocation18 + $0xd0] sm:$0xff]
    %v907 = vld [vmem:[#allocation18 + $0xd8] sm:$0xff]
    %v908 = vld [vmem:[#allocation18 + $0xe0] sm:$0xff]
    %v909 = vld [vmem:[#allocation18 + $0xe8] sm:$0xff]
    %v910 = vld [vmem:[#allocation18 + $0xf0] sm:$0xff]
    %v911 = vld [vmem:[#allocation18 + $0xf8] sm:$0xff]
    %v912 = vld [vmem:[#allocation18 + $0x100] sm:$0xff]
    %v913 = vld [vmem:[#allocation18 + $0x108] sm:$0xff]
    %v914 = vld [vmem:[#allocation18 + $0x110] sm:$0xff]
    %v915 = vld [vmem:[#allocation18 + $0x118] sm:$0xff]
    %v916 = vld [vmem:[#allocation18 + $0x120] sm:$0xff]
    %v917 = vld [vmem:[#allocation18 + $0x128] sm:$0xff]
    %v918 = vld [vmem:[#allocation18 + $0x130] sm:$0xff]
    %v919 = vld [vmem:[#allocation18 + $0x138] sm:$0xff]
    %v920 = vld [vmem:[#allocation18 + $0x140] sm:$0xff]
    %v921 = vld [vmem:[#allocation18 + $0x148] sm:$0xff]
    %v922 = vld [vmem:[#allocation18 + $0x150] sm:$0xff]
    %v923 = vld [vmem:[#allocation18 + $0x158] sm:$0xff]
    %v924 = vld [vmem:[#allocation18 + $0x160] sm:$0xff]
    %v925 = vld [vmem:[#allocation18 + $0x168] sm:$0xff]
    %v926 = vld [vmem:[#allocation18 + $0x170] sm:$0xff]
    %v927 = vld [vmem:[#allocation18 + $0x178] sm:$0xff]
    %v928 = vld [vmem:[#allocation18 + $0x180] sm:$0xff]
    %v929 = vld [vmem:[#allocation18 + $0x188] sm:$0xff]
    %v930 = vld [vmem:[#allocation18 + $0x190] sm:$0xff]
    %v931 = vld [vmem:[#allocation18 + $0x198] sm:$0xff]
    %v932 = vld [vmem:[#allocation18 + $0x1a0] sm:$0xff]
    %v933 = vld [vmem:[#allocation18 + $0x1a8] sm:$0xff]
    %v934 = vld [vmem:[#allocation18 + $0x1b0] sm:$0xff]
    %v935 = vld [vmem:[#allocation18 + $0x1b8] sm:$0xff]
    %v936 = vld [vmem:[#allocation18 + $0x1c0] sm:$0xff]
    %v937 = vld [vmem:[#allocation18 + $0x1c8] sm:$0xff]
    %v938 = vld [vmem:[#allocation18 + $0x1d0] sm:$0xff]
    %v939 = vld [vmem:[#allocation18 + $0x1d8] sm:$0xff]
    %v940 = vld [vmem:[#allocation18 + $0x1e0] sm:$0xff]
    %v941 = vld [vmem:[#allocation18 + $0x1e8] sm:$0xff]
    %v942 = vld [vmem:[#allocation18 + $0x1f0] sm:$0xff]
    %v943 = vld [vmem:[#allocation18 + $0x1f8] sm:$0xff]
    %944 = vmatpush.msra.mxu0 %v940
    %945 = vmatpush.msra.mxu0 %v936
    %946 = vmatpush.msra.mxu0 %v932
    %947 = vmatpush.msra.mxu0 %v928
    %948 = vmatpush.msra.mxu0 %v924
    %949 = vmatpush.msra.mxu0 %v920
    %950 = vmatpush.msra.mxu0 %v916
    %951 = vmatpush.msra.mxu0 %v912
    %952 = vmatpush.msra.mxu0 %v908
    %953 = vmatpush.msra.mxu0 %v904
    %954 = vmatpush.msra.mxu0 %v900
    %955 = vmatpush.msra.mxu0 %v896
    %956 = vmatpush.msra.mxu0 %v892
    %957 = vmatpush.msra.mxu0 %v888
    %958 = vmatpush.msra.mxu0 %v884
    %959 = vmatpush.msra.mxu0 %v880
    %960 = vmatmul.f32.gmra.mxu0 %v879
    %v961 = vpop.f32.mrf.mxu0
    %v962 = vadd.f32 0.0, %v961
    %963 = vdwg.mxu0
    %964 = vmatpush.msra.mxu0 %v941
    %965 = vmatpush.msra.mxu0 %v937
    %966 = vmatpush.msra.mxu0 %v933
    %967 = vmatpush.msra.mxu0 %v929
    %968 = vmatpush.msra.mxu0 %v925
    %969 = vmatpush.msra.mxu0 %v921
    %970 = vmatpush.msra.mxu0 %v917
    %971 = vmatpush.msra.mxu0 %v913
    %972 = vmatpush.msra.mxu0 %v909
    %973 = vmatpush.msra.mxu0 %v905
    %974 = vmatpush.msra.mxu0 %v901
    %975 = vmatpush.msra.mxu0 %v897
    %976 = vmatpush.msra.mxu0 %v893
    %977 = vmatpush.msra.mxu0 %v889
    %978 = vmatpush.msra.mxu0 %v885
    %979 = vmatpush.msra.mxu0 %v881
    %980 = vmatmul.f32.gmra.mxu0 %v879
    %v981 = vpop.f32.mrf.mxu0
    %v982 = vadd.f32 0.0, %v981
    %983 = vdwg.mxu0
    %984 = vmatpush.msra.mxu0 %v942
    %985 = vmatpush.msra.mxu0 %v938
    %986 = vmatpush.msra.mxu0 %v934
    %987 = vmatpush.msra.mxu0 %v930
    %988 = vmatpush.msra.mxu0 %v926
    %989 = vmatpush.msra.mxu0 %v922
    %990 = vmatpush.msra.mxu0 %v918
    %991 = vmatpush.msra.mxu0 %v914
    %992 = vmatpush.msra.mxu0 %v910
    %993 = vmatpush.msra.mxu0 %v906
    %994 = vmatpush.msra.mxu0 %v902
    %995 = vmatpush.msra.mxu0 %v898
    %996 = vmatpush.msra.mxu0 %v894
    %997 = vmatpush.msra.mxu0 %v890
    %998 = vmatpush.msra.mxu0 %v886
    %999 = vmatpush.msra.mxu0 %v882
    %1000 = vmatmul.f32.gmra.mxu0 %v879
    %v1001 = vpop.f32.mrf.mxu0
    %v1002 = vadd.f32 0.0, %v1001
    %1003 = vdwg.mxu0
    %1004 = vmatpush.msra.mxu0 %v943
    %1005 = vmatpush.msra.mxu0 %v939
    %1006 = vmatpush.msra.mxu0 %v935
    %1007 = vmatpush.msra.mxu0 %v931
    %1008 = vmatpush.msra.mxu0 %v927
    %1009 = vmatpush.msra.mxu0 %v923
    %1010 = vmatpush.msra.mxu0 %v919
    %1011 = vmatpush.msra.mxu0 %v915
    %1012 = vmatpush.msra.mxu0 %v911
    %1013 = vmatpush.msra.mxu0 %v907
    %1014 = vmatpush.msra.mxu0 %v903
    %1015 = vmatpush.msra.mxu0 %v899
    %1016 = vmatpush.msra.mxu0 %v895
    %1017 = vmatpush.msra.mxu0 %v891
    %1018 = vmatpush.msra.mxu0 %v887
    %1019 = vmatpush.msra.mxu0 %v883
    %1020 = vmatmul.f32.gmra.mxu0 %v879
    %v1021 = vpop.f32.mrf.mxu0
    %v1022 = vadd.f32 0.0, %v1021
    %1023 = vdwg.mxu0
    %v1024 = vld [vmem:[#allocation17] sm:$0xff]
    %v1025 = vld [vmem:[#allocation17 + $0x8] sm:$0xff]
    %v1028 = vperm.slane %v1024, 0
    %v1029 = vperm.slane %v1024, 4
    %v1030 = vperm.slane %v1025, 0
    %v1031 = vperm.slane %v1025, 4
    %v1036 = vperm.slane %v1028, 0
    %v1037 = vperm.slane %v1029, 0
    %v1038 = vperm.slane %v1030, 0
    %v1039 = vperm.slane %v1031, 0
    %v1040 = vmul.f32 %v962, %v1036
    %v1041 = vmul.f32 %v982, %v1037
    %v1042 = vmul.f32 %v1002, %v1038
    %v1043 = vmul.f32 %v1022, %v1039
    %1044 = vst [vmem:[#allocation3] sm:$0xff] %v1040
    %1045 = vst [vmem:[#allocation3 + $0x8] sm:$0xff] %v1041
    %1046 = vst [vmem:[#allocation3 + $0x10] sm:$0xff] %v1042
    %1047 = vst [vmem:[#allocation3 + $0x18] sm:$0xff] %v1043
    %v1048 = vperm.slane %v1024, 1
    %v1049 = vperm.slane %v1024, 5
    %v1050 = vperm.slane %v1025, 1
    %v1051 = vperm.slane %v1025, 5
    %v1056 = vperm.slane %v1048, 1
    %v1057 = vperm.slane %v1049, 1
    %v1058 = vperm.slane %v1050, 1
    %v1059 = vperm.slane %v1051, 1
    %v1060 = vmul.f32 %v962, %v1056
    %v1061 = vmul.f32 %v982, %v1057
    %v1062 = vmul.f32 %v1002, %v1058
    %v1063 = vmul.f32 %v1022, %v1059
    %1064 = vst [vmem:[#allocation3 + $0x20] sm:$0xff] %v1060
    %1065 = vst [vmem:[#allocation3 + $0x28] sm:$0xff] %v1061
    %1066 = vst [vmem:[#allocation3 + $0x30] sm:$0xff] %v1062
    %1067 = vst [vmem:[#allocation3 + $0x38] sm:$0xff] %v1063
    %v1068 = vperm.slane %v1024, 2
    %v1069 = vperm.slane %v1024, 6
    %v1070 = vperm.slane %v1025, 2
    %v1071 = vperm.slane %v1025, 6
    %v1076 = vperm.slane %v1068, 2
    %v1077 = vperm.slane %v1069, 2
    %v1078 = vperm.slane %v1070, 2
    %v1079 = vperm.slane %v1071, 2
    %v1080 = vmul.f32 %v962, %v1076
    %v1081 = vmul.f32 %v982, %v1077
    %v1082 = vmul.f32 %v1002, %v1078
    %v1083 = vmul.f32 %v1022, %v1079
    %1084 = vst [vmem:[#allocation3 + $0x40] sm:$0xff] %v1080
    %1085 = vst [vmem:[#allocation3 + $0x48] sm:$0xff] %v1081
    %1086 = vst [vmem:[#allocation3 + $0x50] sm:$0xff] %v1082
    %1087 = vst [vmem:[#allocation3 + $0x58] sm:$0xff] %v1083
    %v1088 = vperm.slane %v1024, 3
    %v1089 = vperm.slane %v1024, 7
    %v1090 = vperm.slane %v1025, 3
    %v1091 = vperm.slane %v1025, 7
    %v1096 = vperm.slane %v1088, 3
    %v1097 = vperm.slane %v1089, 3
    %v1098 = vperm.slane %v1090, 3
    %v1099 = vperm.slane %v1091, 3
    %v1100 = vmul.f32 %v962, %v1096
    %v1101 = vmul.f32 %v982, %v1097
    %v1102 = vmul.f32 %v1002, %v1098
    %v1103 = vmul.f32 %v1022, %v1099
    %1104 = vst [vmem:[#allocation3 + $0x60] sm:$0xff] %v1100
    %1105 = vst [vmem:[#allocation3 + $0x68] sm:$0xff] %v1101
    %1106 = vst [vmem:[#allocation3 + $0x70] sm:$0xff] %v1102
    %1107 = vst [vmem:[#allocation3 + $0x78] sm:$0xff] %v1103
    %v1108 = vld [vmem:[%s7] sm:$0xff]
    %v1109 = vld [vmem:[#allocation3] sm:$0xff]
    %v1110 = vld [vmem:[#allocation3 + $0x8] sm:$0xff]
    %v1111 = vld [vmem:[#allocation3 + $0x10] sm:$0xff]
    %v1112 = vld [vmem:[#allocation3 + $0x18] sm:$0xff]
    %v1113 = vld [vmem:[#allocation3 + $0x20] sm:$0xff]
    %v1114 = vld [vmem:[#allocation3 + $0x28] sm:$0xff]
    %v1115 = vld [vmem:[#allocation3 + $0x30] sm:$0xff]
    %v1116 = vld [vmem:[#allocation3 + $0x38] sm:$0xff]
    %v1117 = vld [vmem:[#allocation3 + $0x40] sm:$0xff]
    %v1118 = vld [vmem:[#allocation3 + $0x48] sm:$0xff]
    %v1119 = vld [vmem:[#allocation3 + $0x50] sm:$0xff]
    %v1120 = vld [vmem:[#allocation3 + $0x58] sm:$0xff]
    %v1121 = vld [vmem:[#allocation3 + $0x60] sm:$0xff]
    %v1122 = vld [vmem:[#allocation3 + $0x68] sm:$0xff]
    %v1123 = vld [vmem:[#allocation3 + $0x70] sm:$0xff]
    %v1124 = vld [vmem:[#allocation3 + $0x78] sm:$0xff]
    %v1126 = vsel %vm214, %v1108, 0
    %1128 = vmatpush.msra.mxu0 0.0
    %1129 = vmatpush.msra.mxu0 0.0
    %1130 = vmatpush.msra.mxu0 0.0
    %1131 = vmatpush.msra.mxu0 0.0
    %1132 = vmatpush.msra.mxu0 0.0
    %1133 = vmatpush.msra.mxu0 0.0
    %1134 = vmatpush.msra.mxu0 0.0
    %1135 = vmatpush.msra.mxu0 0.0
    %1136 = vmatpush.msra.mxu0 0.0
    %1137 = vmatpush.msra.mxu0 0.0
    %1138 = vmatpush.msra.mxu0 0.0
    %1139 = vmatpush.msra.mxu0 0.0
    %1140 = vmatpush.msra.mxu0 %v1121
    %1141 = vmatpush.msra.mxu0 %v1117
    %1142 = vmatpush.msra.mxu0 %v1113
    %1143 = vmatpush.msra.mxu0 %v1109
    %1144 = vmatmul.f32.gmra.mxu0 %v1126
    %v1145 = vpop.f32.mrf.mxu0
    %v1146 = vadd.f32 0.0, %v1145
    %1147 = vdwg.mxu0
    %1148 = vmatpush.msra.mxu0 0.0
    %1149 = vmatpush.msra.mxu0 0.0
    %1150 = vmatpush.msra.mxu0 0.0
    %1151 = vmatpush.msra.mxu0 0.0
    %1152 = vmatpush.msra.mxu0 0.0
    %1153 = vmatpush.msra.mxu0 0.0
    %1154 = vmatpush.msra.mxu0 0.0
    %1155 = vmatpush.msra.mxu0 0.0
    %1156 = vmatpush.msra.mxu0 0.0
    %1157 = vmatpush.msra.mxu0 0.0
    %1158 = vmatpush.msra.mxu0 0.0
    %1159 = vmatpush.msra.mxu0 0.0
    %1160 = vmatpush.msra.mxu0 %v1122
    %1161 = vmatpush.msra.mxu0 %v1118
    %1162 = vmatpush.msra.mxu0 %v1114
    %1163 = vmatpush.msra.mxu0 %v1110
    %1164 = vmatmul.f32.gmra.mxu0 %v1126
    %v1165 = vpop.f32.mrf.mxu0
    %v1166 = vadd.f32 0.0, %v1165
    %1167 = vdwg.mxu0
    %1168 = vmatpush.msra.mxu0 0.0
    %1169 = vmatpush.msra.mxu0 0.0
    %1170 = vmatpush.msra.mxu0 0.0
    %1171 = vmatpush.msra.mxu0 0.0
    %1172 = vmatpush.msra.mxu0 0.0
    %1173 = vmatpush.msra.mxu0 0.0
    %1174 = vmatpush.msra.mxu0 0.0
    %1175 = vmatpush.msra.mxu0 0.0
    %1176 = vmatpush.msra.mxu0 0.0
    %1177 = vmatpush.msra.mxu0 0.0
    %1178 = vmatpush.msra.mxu0 0.0
    %1179 = vmatpush.msra.mxu0 0.0
    %1180 = vmatpush.msra.mxu0 %v1123
    %1181 = vmatpush.msra.mxu0 %v1119
    %1182 = vmatpush.msra.mxu0 %v1115
    %1183 = vmatpush.msra.mxu0 %v1111
    %1184 = vmatmul.f32.gmra.mxu0 %v1126
    %v1185 = vpop.f32.mrf.mxu0
    %v1186 = vadd.f32 0.0, %v1185
    %1187 = vdwg.mxu0
    %1188 = vmatpush.msra.mxu0 0.0
    %1189 = vmatpush.msra.mxu0 0.0
    %1190 = vmatpush.msra.mxu0 0.0
    %1191 = vmatpush.msra.mxu0 0.0
    %1192 = vmatpush.msra.mxu0 0.0
    %1193 = vmatpush.msra.mxu0 0.0
    %1194 = vmatpush.msra.mxu0 0.0
    %1195 = vmatpush.msra.mxu0 0.0
    %1196 = vmatpush.msra.mxu0 0.0
    %1197 = vmatpush.msra.mxu0 0.0
    %1198 = vmatpush.msra.mxu0 0.0
    %1199 = vmatpush.msra.mxu0 0.0
    %1200 = vmatpush.msra.mxu0 %v1124
    %1201 = vmatpush.msra.mxu0 %v1120
    %1202 = vmatpush.msra.mxu0 %v1116
    %1203 = vmatpush.msra.mxu0 %v1112
    %1204 = vmatmul.f32.gmra.mxu0 %v1126
    %v1205 = vpop.f32.mrf.mxu0
    %v1206 = vadd.f32 0.0, %v1205
    %1207 = vdwg.mxu0
    %s1208 = scalar_lea.vmem %s9, 16
    %v1209 = vld [vmem:[%s1208] sm:$0xff]
    %s1210 = scalar_lea.vmem %s10, 16
    %v1211 = vld [vmem:[%s1210] sm:$0xff]
    %v1213 = vsel %vm659, %v579, 0
    %1215 = vmatpush.msra.mxu0 0.0
    %1216 = vmatpush.msra.mxu0 0.0
    %1217 = vmatpush.msra.mxu0 0.0
    %1218 = vmatpush.msra.mxu0 0.0
    %1219 = vmatpush.msra.mxu0 0.0
    %1220 = vmatpush.msra.mxu0 0.0
    %1221 = vmatpush.msra.mxu0 0.0
    %1222 = vmatpush.msra.mxu0 0.0
    %1223 = vmatpush.msra.mxu0 0.0
    %1224 = vmatpush.msra.mxu0 0.0
    %1225 = vmatpush.msra.mxu0 0.0
    %1226 = vmatpush.msra.mxu0 0.0
    %1227 = vmatpush.msra.mxu0 0.0
    %1228 = vmatpush.msra.mxu0 0.0
    %1229 = vmatpush.msra.mxu0 0.0
    %1230 = vmatpush.msra.mxu0 %v1146
    %1231 = vmatmul.f32.gmra.mxu0 %v1213
    %v1232 = vpop.f32.mrf.mxu0
    %v1233 = vadd.f32 0.0, %v1232
    %1234 = vdwg.mxu0
    %1235 = vmatpush.msra.mxu0 0.0
    %1236 = vmatpush.msra.mxu0 0.0
    %1237 = vmatpush.msra.mxu0 0.0
    %1238 = vmatpush.msra.mxu0 0.0
    %1239 = vmatpush.msra.mxu0 0.0
    %1240 = vmatpush.msra.mxu0 0.0
    %1241 = vmatpush.msra.mxu0 0.0
    %1242 = vmatpush.msra.mxu0 0.0
    %1243 = vmatpush.msra.mxu0 0.0
    %1244 = vmatpush.msra.mxu0 0.0
    %1245 = vmatpush.msra.mxu0 0.0
    %1246 = vmatpush.msra.mxu0 0.0
    %1247 = vmatpush.msra.mxu0 0.0
    %1248 = vmatpush.msra.mxu0 0.0
    %1249 = vmatpush.msra.mxu0 0.0
    %1250 = vmatpush.msra.mxu0 %v1166
    %1251 = vmatmul.f32.gmra.mxu0 %v1213
    %v1252 = vpop.f32.mrf.mxu0
    %v1253 = vadd.f32 0.0, %v1252
    %1254 = vdwg.mxu0
    %1255 = vmatpush.msra.mxu0 0.0
    %1256 = vmatpush.msra.mxu0 0.0
    %1257 = vmatpush.msra.mxu0 0.0
    %1258 = vmatpush.msra.mxu0 0.0
    %1259 = vmatpush.msra.mxu0 0.0
    %1260 = vmatpush.msra.mxu0 0.0
    %1261 = vmatpush.msra.mxu0 0.0
    %1262 = vmatpush.msra.mxu0 0.0
    %1263 = vmatpush.msra.mxu0 0.0
    %1264 = vmatpush.msra.mxu0 0.0
    %1265 = vmatpush.msra.mxu0 0.0
    %1266 = vmatpush.msra.mxu0 0.0
    %1267 = vmatpush.msra.mxu0 0.0
    %1268 = vmatpush.msra.mxu0 0.0
    %1269 = vmatpush.msra.mxu0 0.0
    %1270 = vmatpush.msra.mxu0 %v1186
    %1271 = vmatmul.f32.gmra.mxu0 %v1213
    %v1272 = vpop.f32.mrf.mxu0
    %v1273 = vadd.f32 0.0, %v1272
    %1274 = vdwg.mxu0
    %1275 = vmatpush.msra.mxu0 0.0
    %1276 = vmatpush.msra.mxu0 0.0
    %1277 = vmatpush.msra.mxu0 0.0
    %1278 = vmatpush.msra.mxu0 0.0
    %1279 = vmatpush.msra.mxu0 0.0
    %1280 = vmatpush.msra.mxu0 0.0
    %1281 = vmatpush.msra.mxu0 0.0
    %1282 = vmatpush.msra.mxu0 0.0
    %1283 = vmatpush.msra.mxu0 0.0
    %1284 = vmatpush.msra.mxu0 0.0
    %1285 = vmatpush.msra.mxu0 0.0
    %1286 = vmatpush.msra.mxu0 0.0
    %1287 = vmatpush.msra.mxu0 0.0
    %1288 = vmatpush.msra.mxu0 0.0
    %1289 = vmatpush.msra.mxu0 0.0
    %1290 = vmatpush.msra.mxu0 %v1206
    %1291 = vmatmul.f32.gmra.mxu0 %v1213
    %v1292 = vpop.f32.mrf.mxu0
    %v1293 = vadd.f32 0.0, %v1292
    %1294 = vdwg.mxu0
    %v1295 = vadd.f32 %v1233, %v1253
    %v1296 = vadd.f32 %v1295, %v1273
    %v1297 = vadd.f32 %v1296, %v1293
    %1298 = vadd.xlane.f32.xlu0 %v1297
    %v1299 = vpop.xlane.xlu0 %1298
    %v1300 = vmul.f32 %v1146, %v1146
    %v1301 = vmul.f32 %v1166, %v1166
    %v1302 = vmul.f32 %v1186, %v1186
    %v1303 = vmul.f32 %v1206, %v1206
    %1304 = vmatpush.msra.mxu0 0.0
    %1305 = vmatpush.msra.mxu0 0.0
    %1306 = vmatpush.msra.mxu0 0.0
    %1307 = vmatpush.msra.mxu0 0.0
    %1308 = vmatpush.msra.mxu0 0.0
    %1309 = vmatpush.msra.mxu0 0.0
    %1310 = vmatpush.msra.mxu0 0.0
    %1311 = vmatpush.msra.mxu0 0.0
    %1312 = vmatpush.msra.mxu0 0.0
    %1313 = vmatpush.msra.mxu0 0.0
    %1314 = vmatpush.msra.mxu0 0.0
    %1315 = vmatpush.msra.mxu0 0.0
    %1316 = vmatpush.msra.mxu0 0.0
    %1317 = vmatpush.msra.mxu0 0.0
    %1318 = vmatpush.msra.mxu0 0.0
    %1319 = vmatpush.msra.mxu0 %v1300
    %1320 = vmatmul.f32.gmra.mxu0 %v1213
    %v1321 = vpop.f32.mrf.mxu0
    %v1322 = vadd.f32 0.0, %v1321
    %1323 = vdwg.mxu0
    %1324 = vmatpush.msra.mxu0 0.0
    %1325 = vmatpush.msra.mxu0 0.0
    %1326 = vmatpush.msra.mxu0 0.0
    %1327 = vmatpush.msra.mxu0 0.0
    %1328 = vmatpush.msra.mxu0 0.0
    %1329 = vmatpush.msra.mxu0 0.0
    %1330 = vmatpush.msra.mxu0 0.0
    %1331 = vmatpush.msra.mxu0 0.0
    %1332 = vmatpush.msra.mxu0 0.0
    %1333 = vmatpush.msra.mxu0 0.0
    %1334 = vmatpush.msra.mxu0 0.0
    %1335 = vmatpush.msra.mxu0 0.0
    %1336 = vmatpush.msra.mxu0 0.0
    %1337 = vmatpush.msra.mxu0 0.0
    %1338 = vmatpush.msra.mxu0 0.0
    %1339 = vmatpush.msra.mxu0 %v1301
    %1340 = vmatmul.f32.gmra.mxu0 %v1213
    %v1341 = vpop.f32.mrf.mxu0
    %v1342 = vadd.f32 0.0, %v1341
    %1343 = vdwg.mxu0
    %1344 = vmatpush.msra.mxu0 0.0
    %1345 = vmatpush.msra.mxu0 0.0
    %1346 = vmatpush.msra.mxu0 0.0
    %1347 = vmatpush.msra.mxu0 0.0
    %1348 = vmatpush.msra.mxu0 0.0
    %1349 = vmatpush.msra.mxu0 0.0
    %1350 = vmatpush.msra.mxu0 0.0
    %1351 = vmatpush.msra.mxu0 0.0
    %1352 = vmatpush.msra.mxu0 0.0
    %1353 = vmatpush.msra.mxu0 0.0
    %1354 = vmatpush.msra.mxu0 0.0
    %1355 = vmatpush.msra.mxu0 0.0
    %1356 = vmatpush.msra.mxu0 0.0
    %1357 = vmatpush.msra.mxu0 0.0
    %1358 = vmatpush.msra.mxu0 0.0
    %1359 = vmatpush.msra.mxu0 %v1302
    %1360 = vmatmul.f32.gmra.mxu0 %v1213
    %v1361 = vpop.f32.mrf.mxu0
    %v1362 = vadd.f32 0.0, %v1361
    %1363 = vdwg.mxu0
    %1364 = vmatpush.msra.mxu0 0.0
    %1365 = vmatpush.msra.mxu0 0.0
    %1366 = vmatpush.msra.mxu0 0.0
    %1367 = vmatpush.msra.mxu0 0.0
    %1368 = vmatpush.msra.mxu0 0.0
    %1369 = vmatpush.msra.mxu0 0.0
    %1370 = vmatpush.msra.mxu0 0.0
    %1371 = vmatpush.msra.mxu0 0.0
    %1372 = vmatpush.msra.mxu0 0.0
    %1373 = vmatpush.msra.mxu0 0.0
    %1374 = vmatpush.msra.mxu0 0.0
    %1375 = vmatpush.msra.mxu0 0.0
    %1376 = vmatpush.msra.mxu0 0.0
    %1377 = vmatpush.msra.mxu0 0.0
    %1378 = vmatpush.msra.mxu0 0.0
    %1379 = vmatpush.msra.mxu0 %v1303
    %1380 = vmatmul.f32.gmra.mxu0 %v1213
    %v1381 = vpop.f32.mrf.mxu0
    %v1382 = vadd.f32 0.0, %v1381
    %1383 = vdwg.mxu0
    %v1384 = vadd.f32 %v1322, %v1342
    %v1385 = vadd.f32 %v1384, %v1362
    %v1386 = vadd.f32 %v1385, %v1382
    %1387 = vadd.xlane.f32.xlu0 %v1386
    %v1388 = vpop.xlane.xlu0 %1387
    %v1389 = vmul.f32 %v1299, %v1299
    %v1390 = vsub.f32 %v1388, %v1389
    %v1391 = vadd.f32 %v1390, 1e-05
    %v1392 = vrsqrt.pop %v1391
    %v1393 = vmul.f32 %v1392, %v1391
    %v1394 = vmul.f32 %v1393, %v1392
    %v1395 = vmul.f32 0.5, %v1394
    %v1396 = vsub.f32 1.5, %v1395
    %v1397 = vmul.f32 %v1392, %v1396
    %vm1398 = vweird.f32 %v1391
    %vm1399 = vweird.f32 %v1392
    %vm1400 = vmor %vm1398, %vm1399
    %v1401 = vsel %vm1400, %v1392, %v1397
    %v1402 = vmul.f32 %v1401, %v1209
    %v1403 = vsub.f32 %v1146, %v1299
    %v1404 = vsub.f32 %v1166, %v1299
    %v1405 = vsub.f32 %v1186, %v1299
    %v1406 = vsub.f32 %v1206, %v1299
    %1408 = vset.pattern.permute.xlu0 0
    %1409 = vperm.xlu0 %1408, %v1402
    %v1410 = vpop.permute.xlu0 %1409
    %v1412 = vmul.f32 %v1403, %v1410
    %v1413 = vmul.f32 %v1404, %v1410
    %v1414 = vmul.f32 %v1405, %v1410
    %v1415 = vmul.f32 %v1406, %v1410
    %1417 = vset.pattern.permute.xlu0 0
    %1418 = vperm.xlu0 %1417, %v1211
    %v1419 = vpop.permute.xlu0 %1418
    %v1421 = vadd.f32 %v1412, %v1419
    %v1422 = vadd.f32 %v1413, %v1419
    %v1423 = vadd.f32 %v1414, %v1419
    %v1424 = vadd.f32 %v1415, %v1419
    %v1425 = vmax.f32 %v1421, 0.0
    %v1426 = vmax.f32 %v1422, 0.0
    %v1427 = vmax.f32 %v1423, 0.0
    %v1428 = vmax.f32 %v1424, 0.0
    %1429 = vrot.lane.b32.xlu0 %v1425, 77
    %v1430 = vpop.permute.xlu0 %1429
    %1431 = vrot.lane.b32.xlu0 %v1426, 77
    %v1432 = vpop.permute.xlu0 %1431
    %1433 = vrot.lane.b32.xlu0 %v1427, 77
    %v1434 = vpop.permute.xlu0 %1433
    %1435 = vrot.lane.b32.xlu0 %v1428, 77
    %v1436 = vpop.permute.xlu0 %1435
    %v1437 = vlaneseq
    %v1438 = vand.u32 %v1437, 127
    %vm1439 = vcmp.lt.s32.totalorder %v1438, 77
    %v1440 = vsel %vm1439, %v1434, %v1436
    %v1441 = vsel %vm1439, %v1432, %v1434
    %v1442 = vsel %vm1439, %v1430, %v1432
    %v1443 = vsel %vm1439, %v1436, %v1430
    %v1444 = vperm.slane %v569, 0
    %v1445 = vperm.slane %v570, 0
    %v1446 = vperm.slane %v571, 0
    %v1447 = vperm.slane %v572, 0
    %v1448 = vmul.f32 %v1442, %v1444
    %v1449 = vmul.f32 %v1441, %v1445
    %v1450 = vmul.f32 %v1440, %v1446
    %v1451 = vmul.f32 %v1443, %v1447
    %1452 = vst [vmem:[#allocation3] sm:$0xff] %v1448
    %1453 = vst [vmem:[#allocation3 + $0x8] sm:$0xff] %v1449
    %1454 = vst [vmem:[#allocation3 + $0x10] sm:$0xff] %v1450
    %1455 = vst [vmem:[#allocation3 + $0x18] sm:$0xff] %v1451
    %1456 = vrot.lane.b32.xlu0 %v1425, 78
    %v1457 = vpop.permute.xlu0 %1456
    %1458 = vrot.lane.b32.xlu0 %v1426, 78
    %v1459 = vpop.permute.xlu0 %1458
    %1460 = vrot.lane.b32.xlu0 %v1427, 78
    %v1461 = vpop.permute.xlu0 %1460
    %1462 = vrot.lane.b32.xlu0 %v1428, 78
    %v1463 = vpop.permute.xlu0 %1462
    %vm1464 = vcmp.lt.s32.totalorder %v1438, 78
    %v1465 = vsel %vm1464, %v1461, %v1463
    %v1466 = vsel %vm1464, %v1459, %v1461
    %v1467 = vsel %vm1464, %v1457, %v1459
    %v1468 = vsel %vm1464, %v1463, %v1457
    %v1469 = vperm.slane %v569, 1
    %v1470 = vperm.slane %v570, 1
    %v1471 = vperm.slane %v571, 1
    %v1472 = vperm.slane %v572, 1
    %v1473 = vmul.f32 %v1467, %v1469
    %v1474 = vmul.f32 %v1466, %v1470
    %v1475 = vmul.f32 %v1465, %v1471
    %v1476 = vmul.f32 %v1468, %v1472
    %1477 = vst [vmem:[#allocation3 + $0x20] sm:$0xff] %v1473
    %1478 = vst [vmem:[#allocation3 + $0x28] sm:$0xff] %v1474
    %1479 = vst [vmem:[#allocation3 + $0x30] sm:$0xff] %v1475
    %1480 = vst [vmem:[#allocation3 + $0x38] sm:$0xff] %v1476
    %1481 = vrot.lane.b32.xlu0 %v1425, 79
    %v1482 = vpop.permute.xlu0 %1481
    %1483 = vrot.lane.b32.xlu0 %v1426, 79
    %v1484 = vpop.permute.xlu0 %1483
    %1485 = vrot.lane.b32.xlu0 %v1427, 79
    %v1486 = vpop.permute.xlu0 %1485
    %1487 = vrot.lane.b32.xlu0 %v1428, 79
    %v1488 = vpop.permute.xlu0 %1487
    %vm1489 = vcmp.lt.s32.totalorder %v1438, 79
    %v1490 = vsel %vm1489, %v1486, %v1488
    %v1491 = vsel %vm1489, %v1484, %v1486
    %v1492 = vsel %vm1489, %v1482, %v1484
    %v1493 = vsel %vm1489, %v1488, %v1482
    %v1494 = vperm.slane %v569, 2
    %v1495 = vperm.slane %v570, 2
    %v1496 = vperm.slane %v571, 2
    %v1497 = vperm.slane %v572, 2
    %v1498 = vmul.f32 %v1492, %v1494
    %v1499 = vmul.f32 %v1491, %v1495
    %v1500 = vmul.f32 %v1490, %v1496
    %v1501 = vmul.f32 %v1493, %v1497
    %1502 = vst [vmem:[#allocation3 + $0x40] sm:$0xff] %v1498
    %1503 = vst [vmem:[#allocation3 + $0x48] sm:$0xff] %v1499
    %1504 = vst [vmem:[#allocation3 + $0x50] sm:$0xff] %v1500
    %1505 = vst [vmem:[#allocation3 + $0x58] sm:$0xff] %v1501
    %1506 = vrot.lane.b32.xlu0 %v1425, 127
    %v1507 = vpop.permute.xlu0 %1506
    %1508 = vrot.lane.b32.xlu0 %v1426, 127
    %v1509 = vpop.permute.xlu0 %1508
    %1510 = vrot.lane.b32.xlu0 %v1427, 127
    %v1511 = vpop.permute.xlu0 %1510
    %1512 = vrot.lane.b32.xlu0 %v1428, 127
    %v1513 = vpop.permute.xlu0 %1512
    %vm1514 = vcmp.lt.s32.totalorder %v1438, 127
    %v1515 = vsel %vm1514, %v1511, %v1513
    %v1516 = vsel %vm1514, %v1509, %v1511
    %v1517 = vsel %vm1514, %v1507, %v1509
    %v1518 = vsel %vm1514, %v1513, %v1507
    %v1519 = vperm.slane %v569, 3
    %v1520 = vperm.slane %v570, 3
    %v1521 = vperm.slane %v571, 3
    %v1522 = vperm.slane %v572, 3
    %v1523 = vmul.f32 %v1517, %v1519
    %v1524 = vmul.f32 %v1516, %v1520
    %v1525 = vmul.f32 %v1515, %v1521
    %v1526 = vmul.f32 %v1518, %v1522
    %1527 = vst [vmem:[#allocation3 + $0x60] sm:$0xff] %v1523
    %1528 = vst [vmem:[#allocation3 + $0x68] sm:$0xff] %v1524
    %1529 = vst [vmem:[#allocation3 + $0x70] sm:$0xff] %v1525
    %1530 = vst [vmem:[#allocation3 + $0x78] sm:$0xff] %v1526
    %v1531 = vperm.slane %v569, 4
    %v1532 = vperm.slane %v570, 4
    %v1533 = vperm.slane %v571, 4
    %v1534 = vperm.slane %v572, 4
    %v1535 = vmul.f32 %v1425, %v1531
    %v1536 = vmul.f32 %v1426, %v1532
    %v1537 = vmul.f32 %v1427, %v1533
    %v1538 = vmul.f32 %v1428, %v1534
    %1539 = vst [vmem:[#allocation3 + $0x80] sm:$0xff] %v1535
    %1540 = vst [vmem:[#allocation3 + $0x88] sm:$0xff] %v1536
    %1541 = vst [vmem:[#allocation3 + $0x90] sm:$0xff] %v1537
    %1542 = vst [vmem:[#allocation3 + $0x98] sm:$0xff] %v1538
    %1543 = vrot.lane.b32.xlu0 %v1425, 1
    %v1544 = vpop.permute.xlu0 %1543
    %1545 = vrot.lane.b32.xlu0 %v1426, 1
    %v1546 = vpop.permute.xlu0 %1545
    %1547 = vrot.lane.b32.xlu0 %v1427, 1
    %v1548 = vpop.permute.xlu0 %1547
    %1549 = vrot.lane.b32.xlu0 %v1428, 1
    %v1550 = vpop.permute.xlu0 %1549
    %vm1551 = vcmp.lt.s32.totalorder %v1438, 1
    %v1552 = vsel %vm1551, %v1548, %v1550
    %v1553 = vsel %vm1551, %v1546, %v1548
    %v1554 = vsel %vm1551, %v1544, %v1546
    %v1555 = vsel %vm1551, %v1550, %v1544
    %v1556 = vperm.slane %v569, 5
    %v1557 = vperm.slane %v570, 5
    %v1558 = vperm.slane %v571, 5
    %v1559 = vperm.slane %v572, 5
    %v1560 = vmul.f32 %v1555, %v1556
    %v1561 = vmul.f32 %v1554, %v1557
    %v1562 = vmul.f32 %v1553, %v1558
    %v1563 = vmul.f32 %v1552, %v1559
    %1564 = vst [vmem:[#allocation3 + $0xa0] sm:$0xff] %v1560
    %1565 = vst [vmem:[#allocation3 + $0xa8] sm:$0xff] %v1561
    %1566 = vst [vmem:[#allocation3 + $0xb0] sm:$0xff] %v1562
    %1567 = vst [vmem:[#allocation3 + $0xb8] sm:$0xff] %v1563
    %1568 = vrot.lane.b32.xlu0 %v1425, 49
    %v1569 = vpop.permute.xlu0 %1568
    %1570 = vrot.lane.b32.xlu0 %v1426, 49
    %v1571 = vpop.permute.xlu0 %1570
    %1572 = vrot.lane.b32.xlu0 %v1427, 49
    %v1573 = vpop.permute.xlu0 %1572
    %1574 = vrot.lane.b32.xlu0 %v1428, 49
    %v1575 = vpop.permute.xlu0 %1574
    %vm1576 = vcmp.lt.s32.totalorder %v1438, 49
    %v1577 = vsel %vm1576, %v1573, %v1575
    %v1578 = vsel %vm1576, %v1571, %v1573
    %v1579 = vsel %vm1576, %v1569, %v1571
    %v1580 = vsel %vm1576, %v1575, %v1569
    %v1581 = vperm.slane %v569, 6
    %v1582 = vperm.slane %v570, 6
    %v1583 = vperm.slane %v571, 6
    %v1584 = vperm.slane %v572, 6
    %v1585 = vmul.f32 %v1580, %v1581
    %v1586 = vmul.f32 %v1579, %v1582
    %v1587 = vmul.f32 %v1578, %v1583
    %v1588 = vmul.f32 %v1577, %v1584
    %1589 = vst [vmem:[#allocation3 + $0xc0] sm:$0xff] %v1585
    %1590 = vst [vmem:[#allocation3 + $0xc8] sm:$0xff] %v1586
    %1591 = vst [vmem:[#allocation3 + $0xd0] sm:$0xff] %v1587
    %1592 = vst [vmem:[#allocation3 + $0xd8] sm:$0xff] %v1588
    %1593 = vrot.lane.b32.xlu0 %v1425, 50
    %v1594 = vpop.permute.xlu0 %1593
    %1595 = vrot.lane.b32.xlu0 %v1426, 50
    %v1596 = vpop.permute.xlu0 %1595
    %1597 = vrot.lane.b32.xlu0 %v1427, 50
    %v1598 = vpop.permute.xlu0 %1597
    %1599 = vrot.lane.b32.xlu0 %v1428, 50
    %v1600 = vpop.permute.xlu0 %1599
    %vm1601 = vcmp.lt.s32.totalorder %v1438, 50
    %v1602 = vsel %vm1601, %v1598, %v1600
    %v1603 = vsel %vm1601, %v1596, %v1598
    %v1604 = vsel %vm1601, %v1594, %v1596
    %v1605 = vsel %vm1601, %v1600, %v1594
    %v1606 = vperm.slane %v569, 7
    %v1607 = vperm.slane %v570, 7
    %v1608 = vperm.slane %v571, 7
    %v1609 = vperm.slane %v572, 7
    %v1610 = vmul.f32 %v1605, %v1606
    %v1611 = vmul.f32 %v1604, %v1607
    %v1612 = vmul.f32 %v1603, %v1608
    %v1613 = vmul.f32 %v1602, %v1609
    %1614 = vst [vmem:[#allocation3 + $0xe0] sm:$0xff] %v1610
    %1615 = vst [vmem:[#allocation3 + $0xe8] sm:$0xff] %v1611
    %1616 = vst [vmem:[#allocation3 + $0xf0] sm:$0xff] %v1612
    %1617 = vst [vmem:[#allocation3 + $0xf8] sm:$0xff] %v1613
    %1618 = vrot.lane.b32.xlu0 %v1425, 51
    %v1619 = vpop.permute.xlu0 %1618
    %1620 = vrot.lane.b32.xlu0 %v1426, 51
    %v1621 = vpop.permute.xlu0 %1620
    %1622 = vrot.lane.b32.xlu0 %v1427, 51
    %v1623 = vpop.permute.xlu0 %1622
    %1624 = vrot.lane.b32.xlu0 %v1428, 51
    %v1625 = vpop.permute.xlu0 %1624
    %vm1626 = vcmp.lt.s32.totalorder %v1438, 51
    %v1627 = vsel %vm1626, %v1623, %v1625
    %v1628 = vsel %vm1626, %v1621, %v1623
    %v1629 = vsel %vm1626, %v1619, %v1621
    %v1630 = vsel %vm1626, %v1625, %v1619
    %v1631 = vperm.slane %v573, 0
    %v1632 = vperm.slane %v574, 0
    %v1633 = vperm.slane %v575, 0
    %v1634 = vperm.slane %v576, 0
    %v1635 = vmul.f32 %v1630, %v1631
    %v1636 = vmul.f32 %v1629, %v1632
    %v1637 = vmul.f32 %v1628, %v1633
    %v1638 = vmul.f32 %v1627, %v1634
    %1639 = vst [vmem:[#allocation3 + $0x100] sm:$0xff] %v1635
    %1640 = vst [vmem:[#allocation3 + $0x108] sm:$0xff] %v1636
    %1641 = vst [vmem:[#allocation3 + $0x110] sm:$0xff] %v1637
    %1642 = vst [vmem:[#allocation3 + $0x118] sm:$0xff] %v1638
    %v1643 = vld [vmem:[#allocation3] sm:$0xff]
    %v1644 = vld [vmem:[#allocation3 + $0x8] sm:$0xff]
    %v1645 = vld [vmem:[#allocation3 + $0x10] sm:$0xff]
    %v1646 = vld [vmem:[#allocation3 + $0x18] sm:$0xff]
    %v1647 = vld [vmem:[#allocation3 + $0x20] sm:$0xff]
    %v1648 = vld [vmem:[#allocation3 + $0x28] sm:$0xff]
    %v1649 = vld [vmem:[#allocation3 + $0x30] sm:$0xff]
    %v1650 = vld [vmem:[#allocation3 + $0x38] sm:$0xff]
    %v1651 = vld [vmem:[#allocation3 + $0x40] sm:$0xff]
    %v1652 = vld [vmem:[#allocation3 + $0x48] sm:$0xff]
    %v1653 = vld [vmem:[#allocation3 + $0x50] sm:$0xff]
    %v1654 = vld [vmem:[#allocation3 + $0x58] sm:$0xff]
    %v1655 = vld [vmem:[#allocation3 + $0x60] sm:$0xff]
    %v1656 = vld [vmem:[#allocation3 + $0x68] sm:$0xff]
    %v1657 = vld [vmem:[#allocation3 + $0x70] sm:$0xff]
    %v1658 = vld [vmem:[#allocation3 + $0x78] sm:$0xff]
    %v1659 = vld [vmem:[#allocation3 + $0x80] sm:$0xff]
    %v1660 = vld [vmem:[#allocation3 + $0x88] sm:$0xff]
    %v1661 = vld [vmem:[#allocation3 + $0x90] sm:$0xff]
    %v1662 = vld [vmem:[#allocation3 + $0x98] sm:$0xff]
    %v1663 = vld [vmem:[#allocation3 + $0xa0] sm:$0xff]
    %v1664 = vld [vmem:[#allocation3 + $0xa8] sm:$0xff]
    %v1665 = vld [vmem:[#allocation3 + $0xb0] sm:$0xff]
    %v1666 = vld [vmem:[#allocation3 + $0xb8] sm:$0xff]
    %v1667 = vld [vmem:[#allocation3 + $0xc0] sm:$0xff]
    %v1668 = vld [vmem:[#allocation3 + $0xc8] sm:$0xff]
    %v1669 = vld [vmem:[#allocation3 + $0xd0] sm:$0xff]
    %v1670 = vld [vmem:[#allocation3 + $0xd8] sm:$0xff]
    %v1671 = vld [vmem:[#allocation3 + $0xe0] sm:$0xff]
    %v1672 = vld [vmem:[#allocation3 + $0xe8] sm:$0xff]
    %v1673 = vld [vmem:[#allocation3 + $0xf0] sm:$0xff]
    %v1674 = vld [vmem:[#allocation3 + $0xf8] sm:$0xff]
    %v1675 = vld [vmem:[#allocation3 + $0x100] sm:$0xff]
    %v1676 = vld [vmem:[#allocation3 + $0x108] sm:$0xff]
    %v1677 = vld [vmem:[#allocation3 + $0x110] sm:$0xff]
    %v1678 = vld [vmem:[#allocation3 + $0x118] sm:$0xff]
    %v1679 = vld [vmem:[#allocation11] sm:$0xff]
    %v1681 = vsel %vm633, %v1679, 0
    %1683 = vmatpush.msra.mxu0 0.0
    %1684 = vmatpush.msra.mxu0 0.0
    %1685 = vmatpush.msra.mxu0 0.0
    %1686 = vmatpush.msra.mxu0 0.0
    %1687 = vmatpush.msra.mxu0 0.0
    %1688 = vmatpush.msra.mxu0 0.0
    %1689 = vmatpush.msra.mxu0 0.0
    %1690 = vmatpush.msra.mxu0 %v1675
    %1691 = vmatpush.msra.mxu0 %v1671
    %1692 = vmatpush.msra.mxu0 %v1667
    %1693 = vmatpush.msra.mxu0 %v1663
    %1694 = vmatpush.msra.mxu0 %v1659
    %1695 = vmatpush.msra.mxu0 %v1655
    %1696 = vmatpush.msra.mxu0 %v1651
    %1697 = vmatpush.msra.mxu0 %v1647
    %1698 = vmatpush.msra.mxu0 %v1643
    %1699 = vmatmul.f32.gmra.mxu0 %v1681
    %v1700 = vpop.f32.mrf.mxu0
    %v1701 = vadd.f32 0.0, %v1700
    %1702 = vdwg.mxu0
    %1703 = vmatpush.msra.mxu0 0.0
    %1704 = vmatpush.msra.mxu0 0.0
    %1705 = vmatpush.msra.mxu0 0.0
    %1706 = vmatpush.msra.mxu0 0.0
    %1707 = vmatpush.msra.mxu0 0.0
    %1708 = vmatpush.msra.mxu0 0.0
    %1709 = vmatpush.msra.mxu0 0.0
    %1710 = vmatpush.msra.mxu0 %v1676
    %1711 = vmatpush.msra.mxu0 %v1672
    %1712 = vmatpush.msra.mxu0 %v1668
    %1713 = vmatpush.msra.mxu0 %v1664
    %1714 = vmatpush.msra.mxu0 %v1660
    %1715 = vmatpush.msra.mxu0 %v1656
    %1716 = vmatpush.msra.mxu0 %v1652
    %1717 = vmatpush.msra.mxu0 %v1648
    %1718 = vmatpush.msra.mxu0 %v1644
    %1719 = vmatmul.f32.gmra.mxu0 %v1681
    %v1720 = vpop.f32.mrf.mxu0
    %v1721 = vadd.f32 0.0, %v1720
    %1722 = vdwg.mxu0
    %1723 = vmatpush.msra.mxu0 0.0
    %1724 = vmatpush.msra.mxu0 0.0
    %1725 = vmatpush.msra.mxu0 0.0
    %1726 = vmatpush.msra.mxu0 0.0
    %1727 = vmatpush.msra.mxu0 0.0
    %1728 = vmatpush.msra.mxu0 0.0
    %1729 = vmatpush.msra.mxu0 0.0
    %1730 = vmatpush.msra.mxu0 %v1677
    %1731 = vmatpush.msra.mxu0 %v1673
    %1732 = vmatpush.msra.mxu0 %v1669
    %1733 = vmatpush.msra.mxu0 %v1665
    %1734 = vmatpush.msra.mxu0 %v1661
    %1735 = vmatpush.msra.mxu0 %v1657
    %1736 = vmatpush.msra.mxu0 %v1653
    %1737 = vmatpush.msra.mxu0 %v1649
    %1738 = vmatpush.msra.mxu0 %v1645
    %1739 = vmatmul.f32.gmra.mxu0 %v1681
    %v1740 = vpop.f32.mrf.mxu0
    %v1741 = vadd.f32 0.0, %v1740
    %1742 = vdwg.mxu0
    %1743 = vmatpush.msra.mxu0 0.0
    %1744 = vmatpush.msra.mxu0 0.0
    %1745 = vmatpush.msra.mxu0 0.0
    %1746 = vmatpush.msra.mxu0 0.0
    %1747 = vmatpush.msra.mxu0 0.0
    %1748 = vmatpush.msra.mxu0 0.0
    %1749 = vmatpush.msra.mxu0 0.0
    %1750 = vmatpush.msra.mxu0 %v1678
    %1751 = vmatpush.msra.mxu0 %v1674
    %1752 = vmatpush.msra.mxu0 %v1670
    %1753 = vmatpush.msra.mxu0 %v1666
    %1754 = vmatpush.msra.mxu0 %v1662
    %1755 = vmatpush.msra.mxu0 %v1658
    %1756 = vmatpush.msra.mxu0 %v1654
    %1757 = vmatpush.msra.mxu0 %v1650
    %1758 = vmatpush.msra.mxu0 %v1646
    %1759 = vmatmul.f32.gmra.mxu0 %v1681
    %v1760 = vpop.f32.mrf.mxu0
    %v1761 = vadd.f32 0.0, %v1760
    %1762 = vdwg.mxu0
    %s1763 = scalar_lea.vmem %s9, 24
    %v1764 = vld [vmem:[%s1763] sm:$0xff]
    %s1765 = scalar_lea.vmem %s10, 24
    %v1766 = vld [vmem:[%s1765] sm:$0xff]
    %1767 = vmatpush.msra.mxu0 0.0
    %1768 = vmatpush.msra.mxu0 0.0
    %1769 = vmatpush.msra.mxu0 0.0
    %1770 = vmatpush.msra.mxu0 0.0
    %1771 = vmatpush.msra.mxu0 0.0
    %1772 = vmatpush.msra.mxu0 0.0
    %1773 = vmatpush.msra.mxu0 0.0
    %1774 = vmatpush.msra.mxu0 0.0
    %1775 = vmatpush.msra.mxu0 0.0
    %1776 = vmatpush.msra.mxu0 0.0
    %1777 = vmatpush.msra.mxu0 0.0
    %1778 = vmatpush.msra.mxu0 0.0
    %1779 = vmatpush.msra.mxu0 0.0
    %1780 = vmatpush.msra.mxu0 0.0
    %1781 = vmatpush.msra.mxu0 0.0
    %1782 = vmatpush.msra.mxu0 %v1701
    %1783 = vmatmul.f32.gmra.mxu0 %v1213
    %v1784 = vpop.f32.mrf.mxu0
    %v1785 = vadd.f32 0.0, %v1784
    %1786 = vdwg.mxu0
    %1787 = vmatpush.msra.mxu0 0.0
    %1788 = vmatpush.msra.mxu0 0.0
    %1789 = vmatpush.msra.mxu0 0.0
    %1790 = vmatpush.msra.mxu0 0.0
    %1791 = vmatpush.msra.mxu0 0.0
    %1792 = vmatpush.msra.mxu0 0.0
    %1793 = vmatpush.msra.mxu0 0.0
    %1794 = vmatpush.msra.mxu0 0.0
    %1795 = vmatpush.msra.mxu0 0.0
    %1796 = vmatpush.msra.mxu0 0.0
    %1797 = vmatpush.msra.mxu0 0.0
    %1798 = vmatpush.msra.mxu0 0.0
    %1799 = vmatpush.msra.mxu0 0.0
    %1800 = vmatpush.msra.mxu0 0.0
    %1801 = vmatpush.msra.mxu0 0.0
    %1802 = vmatpush.msra.mxu0 %v1721
    %1803 = vmatmul.f32.gmra.mxu0 %v1213
    %v1804 = vpop.f32.mrf.mxu0
    %v1805 = vadd.f32 0.0, %v1804
    %1806 = vdwg.mxu0
    %1807 = vmatpush.msra.mxu0 0.0
    %1808 = vmatpush.msra.mxu0 0.0
    %1809 = vmatpush.msra.mxu0 0.0
    %1810 = vmatpush.msra.mxu0 0.0
    %1811 = vmatpush.msra.mxu0 0.0
    %1812 = vmatpush.msra.mxu0 0.0
    %1813 = vmatpush.msra.mxu0 0.0
    %1814 = vmatpush.msra.mxu0 0.0
    %1815 = vmatpush.msra.mxu0 0.0
    %1816 = vmatpush.msra.mxu0 0.0
    %1817 = vmatpush.msra.mxu0 0.0
    %1818 = vmatpush.msra.mxu0 0.0
    %1819 = vmatpush.msra.mxu0 0.0
    %1820 = vmatpush.msra.mxu0 0.0
    %1821 = vmatpush.msra.mxu0 0.0
    %1822 = vmatpush.msra.mxu0 %v1741
    %1823 = vmatmul.f32.gmra.mxu0 %v1213
    %v1824 = vpop.f32.mrf.mxu0
    %v1825 = vadd.f32 0.0, %v1824
    %1826 = vdwg.mxu0
    %1827 = vmatpush.msra.mxu0 0.0
    %1828 = vmatpush.msra.mxu0 0.0
    %1829 = vmatpush.msra.mxu0 0.0
    %1830 = vmatpush.msra.mxu0 0.0
    %1831 = vmatpush.msra.mxu0 0.0
    %1832 = vmatpush.msra.mxu0 0.0
    %1833 = vmatpush.msra.mxu0 0.0
    %1834 = vmatpush.msra.mxu0 0.0
    %1835 = vmatpush.msra.mxu0 0.0
    %1836 = vmatpush.msra.mxu0 0.0
    %1837 = vmatpush.msra.mxu0 0.0
    %1838 = vmatpush.msra.mxu0 0.0
    %1839 = vmatpush.msra.mxu0 0.0
    %1840 = vmatpush.msra.mxu0 0.0
    %1841 = vmatpush.msra.mxu0 0.0
    %1842 = vmatpush.msra.mxu0 %v1761
    %1843 = vmatmul.f32.gmra.mxu0 %v1213
    %v1844 = vpop.f32.mrf.mxu0
    %v1845 = vadd.f32 0.0, %v1844
    %1846 = vdwg.mxu0
    %v1847 = vadd.f32 %v1785, %v1805
    %v1848 = vadd.f32 %v1847, %v1825
    %v1849 = vadd.f32 %v1848, %v1845
    %1850 = vadd.xlane.f32.xlu0 %v1849
    %v1851 = vpop.xlane.xlu0 %1850
    %v1852 = vmul.f32 %v1701, %v1701
    %v1853 = vmul.f32 %v1721, %v1721
    %v1854 = vmul.f32 %v1741, %v1741
    %v1855 = vmul.f32 %v1761, %v1761
    %1856 = vmatpush.msra.mxu0 0.0
    %1857 = vmatpush.msra.mxu0 0.0
    %1858 = vmatpush.msra.mxu0 0.0
    %1859 = vmatpush.msra.mxu0 0.0
    %1860 = vmatpush.msra.mxu0 0.0
    %1861 = vmatpush.msra.mxu0 0.0
    %1862 = vmatpush.msra.mxu0 0.0
    %1863 = vmatpush.msra.mxu0 0.0
    %1864 = vmatpush.msra.mxu0 0.0
    %1865 = vmatpush.msra.mxu0 0.0
    %1866 = vmatpush.msra.mxu0 0.0
    %1867 = vmatpush.msra.mxu0 0.0
    %1868 = vmatpush.msra.mxu0 0.0
    %1869 = vmatpush.msra.mxu0 0.0
    %1870 = vmatpush.msra.mxu0 0.0
    %1871 = vmatpush.msra.mxu0 %v1852
    %1872 = vmatmul.f32.gmra.mxu0 %v1213
    %v1873 = vpop.f32.mrf.mxu0
    %v1874 = vadd.f32 0.0, %v1873
    %1875 = vdwg.mxu0
    %1876 = vmatpush.msra.mxu0 0.0
    %1877 = vmatpush.msra.mxu0 0.0
    %1878 = vmatpush.msra.mxu0 0.0
    %1879 = vmatpush.msra.mxu0 0.0
    %1880 = vmatpush.msra.mxu0 0.0
    %1881 = vmatpush.msra.mxu0 0.0
    %1882 = vmatpush.msra.mxu0 0.0
    %1883 = vmatpush.msra.mxu0 0.0
    %1884 = vmatpush.msra.mxu0 0.0
    %1885 = vmatpush.msra.mxu0 0.0
    %1886 = vmatpush.msra.mxu0 0.0
    %1887 = vmatpush.msra.mxu0 0.0
    %1888 = vmatpush.msra.mxu0 0.0
    %1889 = vmatpush.msra.mxu0 0.0
    %1890 = vmatpush.msra.mxu0 0.0
    %1891 = vmatpush.msra.mxu0 %v1853
    %1892 = vmatmul.f32.gmra.mxu0 %v1213
    %v1893 = vpop.f32.mrf.mxu0
    %v1894 = vadd.f32 0.0, %v1893
    %1895 = vdwg.mxu0
    %1896 = vmatpush.msra.mxu0 0.0
    %1897 = vmatpush.msra.mxu0 0.0
    %1898 = vmatpush.msra.mxu0 0.0
    %1899 = vmatpush.msra.mxu0 0.0
    %1900 = vmatpush.msra.mxu0 0.0
    %1901 = vmatpush.msra.mxu0 0.0
    %1902 = vmatpush.msra.mxu0 0.0
    %1903 = vmatpush.msra.mxu0 0.0
    %1904 = vmatpush.msra.mxu0 0.0
    %1905 = vmatpush.msra.mxu0 0.0
    %1906 = vmatpush.msra.mxu0 0.0
    %1907 = vmatpush.msra.mxu0 0.0
    %1908 = vmatpush.msra.mxu0 0.0
    %1909 = vmatpush.msra.mxu0 0.0
    %1910 = vmatpush.msra.mxu0 0.0
    %1911 = vmatpush.msra.mxu0 %v1854
    %1912 = vmatmul.f32.gmra.mxu0 %v1213
    %v1913 = vpop.f32.mrf.mxu0
    %v1914 = vadd.f32 0.0, %v1913
    %1915 = vdwg.mxu0
    %1916 = vmatpush.msra.mxu0 0.0
    %1917 = vmatpush.msra.mxu0 0.0
    %1918 = vmatpush.msra.mxu0 0.0
    %1919 = vmatpush.msra.mxu0 0.0
    %1920 = vmatpush.msra.mxu0 0.0
    %1921 = vmatpush.msra.mxu0 0.0
    %1922 = vmatpush.msra.mxu0 0.0
    %1923 = vmatpush.msra.mxu0 0.0
    %1924 = vmatpush.msra.mxu0 0.0
    %1925 = vmatpush.msra.mxu0 0.0
    %1926 = vmatpush.msra.mxu0 0.0
    %1927 = vmatpush.msra.mxu0 0.0
    %1928 = vmatpush.msra.mxu0 0.0
    %1929 = vmatpush.msra.mxu0 0.0
    %1930 = vmatpush.msra.mxu0 0.0
    %1931 = vmatpush.msra.mxu0 %v1855
    %1932 = vmatmul.f32.gmra.mxu0 %v1213
    %v1933 = vpop.f32.mrf.mxu0
    %v1934 = vadd.f32 0.0, %v1933
    %1935 = vdwg.mxu0
    %v1936 = vadd.f32 %v1874, %v1894
    %v1937 = vadd.f32 %v1936, %v1914
    %v1938 = vadd.f32 %v1937, %v1934
    %1939 = vadd.xlane.f32.xlu0 %v1938
    %v1940 = vpop.xlane.xlu0 %1939
    %v1941 = vmul.f32 %v1851, %v1851
    %v1942 = vsub.f32 %v1940, %v1941
    %v1943 = vadd.f32 %v1942, 1e-05
    %v1944 = vrsqrt.pop %v1943
    %v1945 = vmul.f32 %v1944, %v1943
    %v1946 = vmul.f32 %v1945, %v1944
    %v1947 = vmul.f32 0.5, %v1946
    %v1948 = vsub.f32 1.5, %v1947
    %v1949 = vmul.f32 %v1944, %v1948
    %vm1950 = vweird.f32 %v1943
    %vm1951 = vweird.f32 %v1944
    %vm1952 = vmor %vm1950, %vm1951
    %v1953 = vsel %vm1952, %v1944, %v1949
    %v1954 = vmul.f32 %v1953, %v1764
    %v1955 = vsub.f32 %v1701, %v1851
    %v1956 = vsub.f32 %v1721, %v1851
    %v1957 = vsub.f32 %v1741, %v1851
    %v1958 = vsub.f32 %v1761, %v1851
    %1960 = vset.pattern.permute.xlu0 0
    %1961 = vperm.xlu0 %1960, %v1954
    %v1962 = vpop.permute.xlu0 %1961
    %v1964 = vmul.f32 %v1955, %v1962
    %v1965 = vmul.f32 %v1956, %v1962
    %v1966 = vmul.f32 %v1957, %v1962
    %v1967 = vmul.f32 %v1958, %v1962
    %1969 = vset.pattern.permute.xlu0 0
    %1970 = vperm.xlu0 %1969, %v1766
    %v1971 = vpop.permute.xlu0 %1970
    %v1973 = vadd.f32 %v1964, %v1971
    %v1974 = vadd.f32 %v1965, %v1971
    %v1975 = vadd.f32 %v1966, %v1971
    %v1976 = vadd.f32 %v1967, %v1971
    %v1977 = vmax.f32 %v1973, 0.0
    %v1978 = vmax.f32 %v1974, 0.0
    %v1979 = vmax.f32 %v1975, 0.0
    %v1980 = vmax.f32 %v1976, 0.0
    %1981 = vst [vmem:[%s16] sm:$0xff] %v1977
    %1982 = vst [vmem:[%s16 + $0x8] sm:$0xff] %v1978
    %1983 = vst [vmem:[%s16 + $0x10] sm:$0xff] %v1979
    %1984 = vst [vmem:[%s16 + $0x18] sm:$0xff] %v1980
    // Predicated region
    $region106: #{decoder_forward.1} parent=1 // pred_check
      _
    $region107: #{decoder_forward.1} parent=1 // pred_check_branch
      %1986 = sbr.rel (0) target = $region109
    $region108: #{decoder_forward.1} parent=1 // pred_region
      _
    $region109: #{decoder_forward.1} parent=1 // pred_fallthru
      _
    // Predicated region
    $region110: #{decoder_forward.1} parent=1 // pred_check
      _
    $region111: #{decoder_forward.1} parent=1 // pred_check_branch
      %1988 = sbr.rel (0) target = $region113
    $region112: #{decoder_forward.1} parent=1 // pred_region
      _
    $region113: #{decoder_forward.1} parent=1 // pred_fallthru
      _
    %1989 = vsyncpa [#allocation5], 1
    %1990 = vsyncpa [#allocation7], 1
    %1991 = vsyncpa [#allocation10], 1
    %1992 = vsyncpa [#allocation13], 1
    %1993 = vsyncpa [#allocation16], 1
    %1994 = vsyncpa [#allocation19], 1

</llo_original>
